<compile_context>
chip_gen: v7x
topology: tpu7x:2x2x1
jax: 0.10.0
libtpu: 0.0.40
codegen_flags: <defaults>
</compile_context>

<pallas_src>
import math

import jax
import jax.numpy as jnp
from jax.experimental import pallas as pl
from jax.experimental.pallas import tpu as pltpu


def _round_up(x, m):
    return (x + m - 1) // m * m


# ----------------------------------------------------------------------------
# Kernel 1: block-complex conv matmul.
#   P  = [patches.real | patches.imag]              (M, 2K)
#   W  = [[Wr, Wi], [-Wi, Wr]]                      (2K, 2Cout)
#   P@W = [ real | imag ] where
#     real = conv_r(x.real) - conv_i(x.imag),  imag = conv_r(x.imag) + conv_i(x.real)
#   bias row = [ (br - bi) | (br + bi) ]  (two independent real Conv2d biases)
# ----------------------------------------------------------------------------
def _conv_kernel_single(p_ref, w_ref, b_ref, o_ref):
    # K fits in one tile: single MXU dot + bias, no accumulator scratch.
    o_ref[...] = (jnp.dot(p_ref[...], w_ref[...],
                          preferred_element_type=jnp.float32)
                  + b_ref[...]).astype(o_ref.dtype)


def _conv_kernel_tiled(p_ref, w_ref, b_ref, o_ref, acc_ref):
    k = pl.program_id(1)

    @pl.when(k == 0)
    def _():
        # Seed the accumulator with the bias (saves the finalize add).
        acc_ref[...] = jnp.broadcast_to(b_ref[...], acc_ref.shape)

    acc_ref[...] += jnp.dot(p_ref[...], w_ref[...],
                            preferred_element_type=jnp.float32)

    @pl.when(k == pl.num_programs(1) - 1)
    def _():
        o_ref[...] = acc_ref[...].astype(o_ref.dtype)


def complex_conv_matmul(p2, w2, b2, *, tm_max=512, tk_max=1024,
                        compute_dtype=jnp.bfloat16):
    """p2: (M, 2K) packed patches, w2: (2K, 2Cout) block-complex weights,
    b2: (2Cout,) pre-combined bias.  Returns (M, N_pad) float32 with
    [:, :Cout] = real, [:, Cout:2Cout] = imag (remaining lanes are padding)."""
    M, K2 = p2.shape
    _, N2 = w2.shape

    # Lane-dense output: pad N to a multiple of 128 (unmasked vector stores).
    N2p = _round_up(N2, 128)
    K2p = _round_up(K2, 128)
    single_pass = K2p <= tk_max
    tk = K2p if single_pass else tk_max
    K2p = _round_up(K2p, tk)            # zero-pad K so tk divides it exactly

    if K2p != K2:
        p2 = jnp.pad(p2, ((0, 0), (0, K2p - K2)))
        w2 = jnp.pad(w2, ((0, K2p - K2), (0, 0)))
    if N2p != N2:
        w2 = jnp.pad(w2, ((0, 0), (0, N2p - N2)))
        b2 = jnp.pad(b2, (0, N2p - N2))
    b_row = b2.reshape(1, N2p).astype(jnp.float32)

    # bf16 MXU inputs (f32 accumulation via preferred_element_type).
    p2 = p2.astype(compute_dtype)
    w2 = w2.astype(compute_dtype)

    # tm: multiple of 16 (bf16 sublane packing); guarantee >= 2 M tiles so the
    # "parallel" axis spans both v7x TensorCores.
    tm = min(tm_max, _round_up(M, 16))
    if tm >= M and M > 16:
        tm = _round_up(pl.cdiv(M, 2), 16)
    gm = pl.cdiv(M, tm)

    cp = pltpu.CompilerParams(
        dimension_semantics=("parallel",) if single_pass
        else ("parallel", "arbitrary"),
        vmem_limit_bytes=32 * 1024 * 1024)

    if single_pass:
        return pl.pallas_call(
            _conv_kernel_single,
            out_shape=jax.ShapeDtypeStruct((M, N2p), jnp.float32),
            grid=(gm,),
            in_specs=[
                pl.BlockSpec((tm, K2p), lambda i: (i, 0)),
                pl.BlockSpec((K2p, N2p), lambda i: (0, 0)),   # W resident
                pl.BlockSpec((1, N2p), lambda i: (0, 0)),     # bias resident
            ],
            out_specs=pl.BlockSpec((tm, N2p), lambda i: (i, 0)),
            compiler_params=cp,
        )(p2, w2, b_row)

    # General K-tiled fallback (large in_channels * kernel_size^2).
    gk = K2p // tk
    return pl.pallas_call(
        _conv_kernel_tiled,
        out_shape=jax.ShapeDtypeStruct((M, N2p), jnp.float32),
        grid=(gm, gk),
        in_specs=[
            pl.BlockSpec((tm, tk), lambda i, k: (i, k)),
            pl.BlockSpec((tk, N2p), lambda i, k: (k, 0)),
            pl.BlockSpec((1, N2p), lambda i, k: (0, 0)),
        ],
        out_specs=pl.BlockSpec((tm, N2p), lambda i, k: (i, 0)),
        scratch_shapes=[pltpu.VMEM((tm, N2p), jnp.float32)],
        compiler_params=cp,
    )(p2, w2, b_row)


# ----------------------------------------------------------------------------
# Kernel 2: complex squash on the flat capsule-major stream.
#   Input layout: (R, 128) tiles of the (b, c, ho, wo) flatten; each group of
#   D consecutive lanes is one capsule (D | 128), so the per-capsule reduction
#   sum(z^2) and the broadcast of the scale back to lanes are two tiny constant
#   matmuls (G: 128 x (128/D) group-indicator, GT: its transpose).
#   squared_norm = sum_d z_d^2   (complex square, matches (x**2).sum())
#   scale        = tanh(sqrt(squared_norm))
#   out          = scale * z / (sqrt(squared_norm) + 1e-8)
# ----------------------------------------------------------------------------
def _squash_kernel(zr_ref, zi_ref, g_ref, gt_ref, or_ref, oi_ref):
    a = zr_ref[...]                                   # (T, 128) real
    b = zi_ref[...]                                   # (T, 128) imag
    g = g_ref[...]                                    # (128, ng)
    gt = gt_ref[...]                                  # (ng, 128)
    # complex squared "norm" per capsule group (segmented reduce on the MXU)
    sn_re = jnp.dot(a * a - b * b, g, preferred_element_type=jnp.float32)
    sn_im = jnp.dot(2.0 * a * b, g, preferred_element_type=jnp.float32)
    # principal complex sqrt  s = sqrt(sn)
    mag = jnp.sqrt(sn_re * sn_re + sn_im * sn_im)
    s_re = jnp.sqrt(jnp.maximum(0.5 * (mag + sn_re), 0.0))
    s_im = jnp.where(sn_im >= 0.0, 1.0, -1.0) * jnp.sqrt(
        jnp.maximum(0.5 * (mag - sn_re), 0.0))
    # complex tanh(s): tanh(x+iy) = (sinh 2x + i sin 2y)/(cosh 2x + cos 2y),
    # written with e = exp(-2x) (stable since s_re >= 0).  The denominator can
    # approach 0 near tanh poles -> use a true divide here (not approx recip).
    e = jnp.exp(-2.0 * s_re)
    v = 2.0 * s_im
    denom = 1.0 + e * e + 2.0 * e * jnp.cos(v)
    t_re = (1.0 - e * e) / denom
    t_im = (2.0 * e * jnp.sin(v)) / denom
    # c = tanh(s) / (s + 1e-8); |s+eps|^2 is well conditioned -> approx recip
    d_re = s_re + 1e-8
    d_im = s_im
    inv_dd = pl.reciprocal(d_re * d_re + d_im * d_im, approx=True)
    c_re = (t_re * d_re + t_im * d_im) * inv_dd
    c_im = (t_im * d_re - t_re * d_im) * inv_dd
    # broadcast per-capsule scale back to the D lanes of each capsule
    cr = jnp.dot(c_re, gt, preferred_element_type=jnp.float32)
    ci = jnp.dot(c_im, gt, preferred_element_type=jnp.float32)
    or_ref[...] = cr * a - ci * b
    oi_ref[...] = cr * b + ci * a


def squash_pallas(zr, zi, capsule_dim, *, row_tile_max=512):
    """zr/zi: (R, 128) float32 lane-dense views of the capsule-major flatten.
    Each group of `capsule_dim` lanes is one capsule.  Returns (R, 128) pair."""
    R, lanes = zr.shape
    assert lanes == 128 and 128 % capsule_dim == 0
    ng = 128 // capsule_dim
    lane = jnp.arange(128, dtype=jnp.int32)
    g = (lane[:, None] // capsule_dim ==
         jnp.arange(ng, dtype=jnp.int32)[None, :]).astype(jnp.float32)
    gt = g.T

    tr = min(row_tile_max, _round_up(R, 8))
    if tr >= R and R > 8:
        tr = _round_up(pl.cdiv(R, 2), 8)     # >= 2 tiles (v7x megacore)
    blk = pl.BlockSpec((tr, 128), lambda i: (i, 0))

    return pl.pallas_call(
        _squash_kernel,
        out_shape=[jax.ShapeDtypeStruct((R, 128), jnp.float32),
                   jax.ShapeDtypeStruct((R, 128), jnp.float32)],
        grid=(pl.cdiv(R, tr),),
        in_specs=[blk, blk,
                  pl.BlockSpec((128, ng), lambda i: (0, 0)),
                  pl.BlockSpec((ng, 128), lambda i: (0, 0))],
        out_specs=[blk, blk],
        compiler_params=pltpu.CompilerParams(
            dimension_semantics=("parallel",),
            vmem_limit_bytes=32 * 1024 * 1024),
    )(zr, zi, g, gt)


# ----------------------------------------------------------------------------
# Glue: im2col, parameter setup, PrimaryCaps forward
# ----------------------------------------------------------------------------
def im2col(x, k, stride):
    """x: (B, C, H, W) -> patches (B*Ho*Wo, C*k*k), flattened in the same
    (C_in, kh, kw) order as torch Conv2d weight.reshape(Cout, -1)."""
    B, C, H, W = x.shape
    Ho = (H - k) // stride + 1
    Wo = (W - k) // stride + 1
    cols = []
    for i in range(k):
        for j in range(k):
            cols.append(x[:, :,
                          i:i + stride * (Ho - 1) + 1:stride,
                          j:j + stride * (Wo - 1) + 1:stride])
    p = jnp.stack(cols, axis=-1)            # (B, C, Ho, Wo, k*k)
    p = p.transpose(0, 2, 3, 1, 4)          # (B, Ho, Wo, C, k*k)
    return p.reshape(B * Ho * Wo, C * k * k), Ho, Wo


class PrimaryCapsPallas:
    """Pallas implementation of PrimaryCaps.forward (complex conv + squash)."""

    def __init__(self, num_conv_units, in_channels, out_channels, kernel_size,
                 stride, key, compute_dtype=jnp.bfloat16):
        self.k = kernel_size
        self.stride = stride
        self.out_channels = out_channels
        self.cout_total = out_channels * num_conv_units
        self.compute_dtype = compute_dtype   # bf16 MXU inputs; f32 accumulation
        # TODO(synk): support capsule dims that do not divide 128 (would need a
        # fallback squash layout).
        assert 128 % out_channels == 0
        fan_in = in_channels * kernel_size * kernel_size
        bound = 1.0 / math.sqrt(fan_in)
        ks = jax.random.split(key, 4)
        shape_w = (self.cout_total, in_channels, kernel_size, kernel_size)
        # deterministic synthetic params (Conv2d-style uniform init)
        self.w_r = jax.random.uniform(ks[0], shape_w, jnp.float32, -bound, bound)
        self.w_i = jax.random.uniform(ks[1], shape_w, jnp.float32, -bound, bound)
        self.b_r = jax.random.uniform(ks[2], (self.cout_total,), jnp.float32,
                                      -bound, bound)
        self.b_i = jax.random.uniform(ks[3], (self.cout_total,), jnp.float32,
                                      -bound, bound)

    def __call__(self, x_real, x_imag):
        B = x_real.shape[0]
        C = self.cout_total
        D = self.out_channels
        cd = self.compute_dtype

        # One im2col on the channel-concatenated [real | imag] input gives the
        # packed [Pr | Pi] patch matrix directly (channel is the outer column
        # index), emitted straight in the MXU compute dtype.
        # TODO(synk): fuse im2col into the conv kernel (overlapping-window DMA
        # from HBM) to remove the remaining k^2 patch inflation entirely.
        x_cat = jnp.concatenate([x_real, x_imag], axis=1).astype(cd)
        p2, Ho, Wo = im2col(x_cat, self.k, self.stride)          # (M, 2K)

        wr = self.w_r.reshape(C, -1).T                           # (K, Cout)
        wi = self.w_i.reshape(C, -1).T
        w2 = jnp.concatenate(
            [jnp.concatenate([wr, wi], axis=1),
             jnp.concatenate([-wi, wr], axis=1)], axis=0)        # (2K, 2Cout)
        # real output bias = (b_r - b_i), imag output bias = (b_r + b_i)
        b2 = jnp.concatenate([self.b_r - self.b_i, self.b_r + self.b_i])

        out = complex_conv_matmul(p2, w2, b2, compute_dtype=cd)  # (M, N_pad) f32

        # Single transpose to channel-major (b, c, ho, wo) -- the exact order
        # torch's contiguous().view(B, -1, D) flattens.  Everything downstream
        # (squash, final reshape) is layout-free after this.
        conv_cm = out[:, :2 * C].reshape(B, Ho * Wo, 2 * C).transpose(0, 2, 1)
        zr = conv_cm[:, :C, :].reshape(-1)                       # (B*C*Ho*Wo,)
        zi = conv_cm[:, C:, :].reshape(-1)

        assert (C * Ho * Wo) % D == 0
        n_caps = (C * Ho * Wo) // D
        L = zr.shape[0]
        Lp = _round_up(L, 128)
        if Lp != L:
            zr = jnp.pad(zr, (0, Lp - L))
            zi = jnp.pad(zi, (0, Lp - L))
        R = Lp // 128

        sr, si = squash_pallas(zr.reshape(R, 128), zi.reshape(R, 128), D)
        sr = sr.reshape(-1)[:L].reshape(B, n_caps, D)
        si = si.reshape(-1)[:L].reshape(B, n_caps, D)
        return jax.lax.complex(sr, si).astype(jnp.complex64)


# ----------------------------------------------------------------------------
# Pure-JAX reference (lax.conv + real-arithmetic complex squash) for the
# tolerance gate of the f32 path.
# ----------------------------------------------------------------------------
def _conv2d_nchw(x, w, b, stride):
    y = jax.lax.conv_general_dilated(
        x, w, window_strides=(stride, stride), padding="VALID",
        dimension_numbers=("NCHW", "OIHW", "NCHW"),
        precision=jax.lax.Precision.HIGHEST)
    return y + b[None, :, None, None]


def reference_forward(mod, x_real, x_imag):
    rr = _conv2d_nchw(x_real, mod.w_r, mod.b_r, mod.stride)
    ii = _conv2d_nchw(x_imag, mod.w_i, mod.b_i, mod.stride)
    ri = _conv2d_nchw(x_imag, mod.w_r, mod.b_r, mod.stride)
    ir = _conv2d_nchw(x_real, mod.w_i, mod.b_i, mod.stride)
    cr = rr - ii                                   # (B, C, Ho, Wo)
    ci = ri + ir
    B = cr.shape[0]
    D = mod.out_channels
    cr = cr.reshape(B, -1, D)
    ci = ci.reshape(B, -1, D)
    # squared_norm = sum(z^2) (complex square), principal sqrt via polar form
    sn_re = jnp.sum(cr * cr - ci * ci, axis=-1, keepdims=True)
    sn_im = jnp.sum(2.0 * cr * ci, axis=-1, keepdims=True)
    r = jnp.sqrt(jnp.sqrt(sn_re * sn_re + sn_im * sn_im))
    th = 0.5 * jnp.arctan2(sn_im, sn_re)
    s_re = r * jnp.cos(th)
    s_im = r * jnp.sin(th)
    # complex tanh via sinh/cosh
    ch_re = jnp.cosh(s_re) * jnp.cos(s_im)
    ch_im = jnp.sinh(s_re) * jnp.sin(s_im)
    sh_re = jnp.sinh(s_re) * jnp.cos(s_im)
    sh_im = jnp.cosh(s_re) * jnp.sin(s_im)
    cden = ch_re * ch_re + ch_im * ch_im
    t_re = (sh_re * ch_re + sh_im * ch_im) / cden
    t_im = (sh_im * ch_re - sh_re * ch_im) / cden
    # scale / (s + 1e-8), then * z
    d_re = s_re + 1e-8
    d_im = s_im
    dd = d_re * d_re + d_im * d_im
    c_re = (t_re * d_re + t_im * d_im) / dd
    c_im = (t_im * d_re - t_re * d_im) / dd
    return jax.lax.complex(c_re * cr - c_im * ci, c_re * ci + c_im * cr)


if __name__ == "__main__":
    key = jax.random.PRNGKey(0)
    k_x, k_y, k_p = jax.random.split(key, 3)

    # small shapes consistent with the module
    B, C_in, H, W = 2, 4, 16, 16
    num_conv_units, out_channels, kernel_size, stride = 4, 8, 3, 2

    x_real = jax.random.normal(k_x, (B, C_in, H, W), jnp.float32)
    x_imag = jax.random.normal(k_y, (B, C_in, H, W), jnp.float32)

    # --- f32 run: tolerance-gated against a pure-JAX reference -------------
    mod_f32 = PrimaryCapsPallas(num_conv_units, C_in, out_channels,
                                kernel_size, stride, k_p,
                                compute_dtype=jnp.float32)
    out_f32 = jax.jit(lambda a, b: mod_f32(a, b))(x_real, x_imag)
    out_f32 = jax.block_until_ready(out_f32)
    ref = reference_forward(mod_f32, x_real, x_imag)
    err = jnp.abs(out_f32 - ref)
    tol = 5e-2 + 1e-1 * jnp.abs(ref)
    assert bool(jnp.all(err <= tol)), float(jnp.max(err))

    # --- bf16 MXU run (default perf path) -----------------------------------
    mod = PrimaryCapsPallas(num_conv_units, C_in, out_channels,
                            kernel_size, stride, k_p)
    out = jax.jit(lambda a, b: mod(a, b))(x_real, x_imag)
    out = jax.block_until_ready(out)

    Ho = (H - kernel_size) // stride + 1
    expected_caps = out_channels * num_conv_units * Ho * Ho // out_channels
    assert out.dtype == jnp.complex64
    assert out.shape == (B, expected_caps, out_channels), out.shape
    assert bool(jnp.all(jnp.isfinite(out.real)) & jnp.all(jnp.isfinite(out.imag)))
    print("KERNEL_OK")
</pallas_src>

<mosaic_0001>
module attributes {stable_mosaic.version = 11 : i64} {
  func.func @_conv_kernel_single(%arg0: i32, %arg1: memref<64x128xf32, #tpu.memory_space<vmem>>, %arg2: memref<128x128xf32, #tpu.memory_space<vmem>>, %arg3: memref<1x128xf32, #tpu.memory_space<vmem>>, %arg4: memref<64x128xf32, #tpu.memory_space<vmem>>) attributes {dimension_semantics = [#tpu.dimension_semantics<parallel>], iteration_bounds = array<i64: 2>, scalar_prefetch = 0 : i64, scratch_operands = 0 : i64, tpu.core_type = #tpu.core_type<tc>, window_params = [{transform_indices = @transform_0, window_bounds = array<i64: 64, 128>}, {pipeline_mode = #tpu.pipeline_mode<synchronous>, transform_indices = @transform_1, window_bounds = array<i64: 128, 128>}, {pipeline_mode = #tpu.pipeline_mode<synchronous>, transform_indices = @transform_2, window_bounds = array<i64: 1, 128>}, {transform_indices = @transform_3, window_bounds = array<i64: 64, 128>}]} {
    %c0 = arith.constant 0 : index
    %c0_0 = arith.constant 0 : index
    %0 = vector.load %arg1[%c0, %c0_0] : memref<64x128xf32, #tpu.memory_space<vmem>>, vector<64x128xf32>
    %c0_1 = arith.constant 0 : index
    %c0_2 = arith.constant 0 : index
    %1 = vector.load %arg2[%c0_1, %c0_2] : memref<128x128xf32, #tpu.memory_space<vmem>>, vector<128x128xf32>
    %cst = arith.constant dense<0.000000e+00> : vector<64x128xf32>
    %2 = tpu.matmul %0, %1, %cst {dimension_numbers = #tpu.dot_dimension_numbers<[1], [0], [0], [1], [0, 0, 1, 1], [], []>} : vector<64x128xf32>, vector<128x128xf32>, vector<64x128xf32> -> vector<64x128xf32>
    %c0_3 = arith.constant 0 : index
    %c0_4 = arith.constant 0 : index
    %3 = vector.load %arg3[%c0_3, %c0_4] : memref<1x128xf32, #tpu.memory_space<vmem>>, vector<1x128xf32>
    %4 = vector.broadcast %3 : vector<1x128xf32> to vector<64x128xf32>
    %5 = arith.addf %2, %4 : vector<64x128xf32>
    %c0_5 = arith.constant 0 : index
    %c0_6 = arith.constant 0 : index
    %6 = vector.load %arg4[%c0_5, %c0_6] : memref<64x128xf32, #tpu.memory_space<vmem>>, vector<64x128xf32>
    tpu.vector_store %arg4[%c0_5, %c0_6], %5 {strides = array<i32>} : memref<64x128xf32, #tpu.memory_space<vmem>>, vector<64x128xf32>,
    return
  }
  func.func @transform_0(%arg0: i32) -> (i32, i32) {
    %c0_i32 = arith.constant 0 : i32
    %c0_i32_0 = arith.constant 0 : i32
    return %arg0, %c0_i32 : i32, i32
  }
  func.func @transform_1(%arg0: i32) -> (i32, i32) {
    %c0_i32 = arith.constant 0 : i32
    %c0_i32_0 = arith.constant 0 : i32
    %c0_i32_1 = arith.constant 0 : i32
    return %c0_i32, %c0_i32_0 : i32, i32
  }
  func.func @transform_2(%arg0: i32) -> (i32, i32) {
    %c0_i32 = arith.constant 0 : i32
    %c0_i32_0 = arith.constant 0 : i32
    %c0_i32_1 = arith.constant 0 : i32
    return %c0_i32, %c0_i32_0 : i32, i32
  }
  func.func @transform_3(%arg0: i32) -> (i32, i32) {
    %c0_i32 = arith.constant 0 : i32
    %c0_i32_0 = arith.constant 0 : i32
    return %arg0, %c0_i32 : i32, i32
  }
}

module attributes {stable_mosaic.version = 11 : i64} {
  func.func @_squash_kernel(%arg0: i32, %arg1: memref<16x128xf32, #tpu.memory_space<vmem>>, %arg2: memref<16x128xf32, #tpu.memory_space<vmem>>, %arg3: memref<128x16xf32, #tpu.memory_space<vmem>>, %arg4: memref<16x128xf32, #tpu.memory_space<vmem>>, %arg5: memref<16x128xf32, #tpu.memory_space<vmem>>, %arg6: memref<16x128xf32, #tpu.memory_space<vmem>>) attributes {dimension_semantics = [#tpu.dimension_semantics<parallel>], iteration_bounds = array<i64: 2>, scalar_prefetch = 0 : i64, scratch_operands = 0 : i64, tpu.core_type = #tpu.core_type<tc>, window_params = [{transform_indices = @transform_0, window_bounds = array<i64: 16, 128>}, {transform_indices = @transform_1, window_bounds = array<i64: 16, 128>}, {pipeline_mode = #tpu.pipeline_mode<synchronous>, transform_indices = @transform_2, window_bounds = array<i64: 128, 16>}, {pipeline_mode = #tpu.pipeline_mode<synchronous>, transform_indices = @transform_3, window_bounds = array<i64: 16, 128>}, {transform_indices = @transform_4, window_bounds = array<i64: 16, 128>}, {transform_indices = @transform_5, window_bounds = array<i64: 16, 128>}]} {
    %c0 = arith.constant 0 : index
    %c0_0 = arith.constant 0 : index
    %0 = vector.load %arg1[%c0, %c0_0] : memref<16x128xf32, #tpu.memory_space<vmem>>, vector<16x128xf32>
    %c0_1 = arith.constant 0 : index
    %c0_2 = arith.constant 0 : index
    %1 = vector.load %arg2[%c0_1, %c0_2] : memref<16x128xf32, #tpu.memory_space<vmem>>, vector<16x128xf32>
    %c0_3 = arith.constant 0 : index
    %c0_4 = arith.constant 0 : index
    %2 = vector.load %arg3[%c0_3, %c0_4] : memref<128x16xf32, #tpu.memory_space<vmem>>, vector<128x16xf32>
    %c0_5 = arith.constant 0 : index
    %c0_6 = arith.constant 0 : index
    %3 = vector.load %arg4[%c0_5, %c0_6] : memref<16x128xf32, #tpu.memory_space<vmem>>, vector<16x128xf32>
    %4 = arith.mulf %0, %0 : vector<16x128xf32>
    %5 = arith.mulf %1, %1 : vector<16x128xf32>
    %6 = arith.subf %4, %5 : vector<16x128xf32>
    %cst = arith.constant dense<0.000000e+00> : vector<16x16xf32>
    %7 = tpu.matmul %6, %2, %cst {dimension_numbers = #tpu.dot_dimension_numbers<[1], [0], [0], [1], [0, 0, 1, 1], [], []>} : vector<16x128xf32>, vector<128x16xf32>, vector<16x16xf32> -> vector<16x16xf32>
    %cst_7 = arith.constant 2.000000e+00 : f32
    %8 = vector.broadcast %cst_7 : f32 to vector<16x128xf32>
    %9 = arith.mulf %8, %0 : vector<16x128xf32>
    %10 = arith.mulf %9, %1 : vector<16x128xf32>
    %cst_8 = arith.constant dense<0.000000e+00> : vector<16x16xf32>
    %11 = tpu.matmul %10, %2, %cst_8 {dimension_numbers = #tpu.dot_dimension_numbers<[1], [0], [0], [1], [0, 0, 1, 1], [], []>} : vector<16x128xf32>, vector<128x16xf32>, vector<16x16xf32> -> vector<16x16xf32>
    %12 = arith.mulf %7, %7 : vector<16x16xf32>
    %13 = arith.mulf %11, %11 : vector<16x16xf32>
    %14 = arith.addf %12, %13 : vector<16x16xf32>
    %15 = math.sqrt %14 : vector<16x16xf32>
    %16 = arith.addf %15, %7 : vector<16x16xf32>
    %cst_9 = arith.constant 5.000000e-01 : f32
    %17 = vector.broadcast %cst_9 : f32 to vector<16x16xf32>
    %18 = arith.mulf %17, %16 : vector<16x16xf32>
    %cst_10 = arith.constant 0.000000e+00 : f32
    %19 = vector.broadcast %cst_10 : f32 to vector<16x16xf32>
    %20 = arith.maximumf %18, %19 : vector<16x16xf32>
    %21 = math.sqrt %20 : vector<16x16xf32>
    %cst_11 = arith.constant 0.000000e+00 : f32
    %22 = vector.broadcast %cst_11 : f32 to vector<16x16xf32>
    %23 = arith.cmpf oge, %11, %22 : vector<16x16xf32>
    %cst_12 = arith.constant 1.000000e+00 : f32
    %cst_13 = arith.constant -1.000000e+00 : f32
    %24 = vector.broadcast %cst_12 : f32 to vector<16x16xf32>
    %25 = vector.broadcast %cst_13 : f32 to vector<16x16xf32>
    %26 = arith.select %23, %24, %25 : vector<16x16xi1>, vector<16x16xf32>
    %27 = arith.subf %15, %7 : vector<16x16xf32>
    %cst_14 = arith.constant 5.000000e-01 : f32
    %28 = vector.broadcast %cst_14 : f32 to vector<16x16xf32>
    %29 = arith.mulf %28, %27 : vector<16x16xf32>
    %cst_15 = arith.constant 0.000000e+00 : f32
    %30 = vector.broadcast %cst_15 : f32 to vector<16x16xf32>
    %31 = arith.maximumf %29, %30 : vector<16x16xf32>
    %32 = math.sqrt %31 : vector<16x16xf32>
    %33 = arith.mulf %26, %32 : vector<16x16xf32>
    %cst_16 = arith.constant -2.000000e+00 : f32
    %34 = vector.broadcast %cst_16 : f32 to vector<16x16xf32>
    %35 = arith.mulf %34, %21 : vector<16x16xf32>
    %36 = math.exp %35 : vector<16x16xf32>
    %cst_17 = arith.constant 2.000000e+00 : f32
    %37 = vector.broadcast %cst_17 : f32 to vector<16x16xf32>
    %38 = arith.mulf %37, %33 : vector<16x16xf32>
    %39 = arith.mulf %36, %36 : vector<16x16xf32>
    %cst_18 = arith.constant 1.000000e+00 : f32
    %40 = vector.broadcast %cst_18 : f32 to vector<16x16xf32>
    %41 = arith.addf %40, %39 : vector<16x16xf32>
    %cst_19 = arith.constant 2.000000e+00 : f32
    %42 = vector.broadcast %cst_19 : f32 to vector<16x16xf32>
    %43 = arith.mulf %42, %36 : vector<16x16xf32>
    %44 = math.cos %38 : vector<16x16xf32>
    %45 = arith.mulf %43, %44 : vector<16x16xf32>
    %46 = arith.addf %41, %45 : vector<16x16xf32>
    %47 = arith.mulf %36, %36 : vector<16x16xf32>
    %cst_20 = arith.constant 1.000000e+00 : f32
    %48 = vector.broadcast %cst_20 : f32 to vector<16x16xf32>
    %49 = arith.subf %48, %47 : vector<16x16xf32>
    %50 = arith.divf %49, %46 : vector<16x16xf32>
    %cst_21 = arith.constant 2.000000e+00 : f32
    %51 = vector.broadcast %cst_21 : f32 to vector<16x16xf32>
    %52 = arith.mulf %51, %36 : vector<16x16xf32>
    %53 = math.sin %38 : vector<16x16xf32>
    %54 = arith.mulf %52, %53 : vector<16x16xf32>
    %55 = arith.divf %54, %46 : vector<16x16xf32>
    %cst_22 = arith.constant 9.99999993E-9 : f32
    %56 = vector.broadcast %cst_22 : f32 to vector<16x16xf32>
    %57 = arith.addf %21, %56 : vector<16x16xf32>
    %58 = arith.mulf %57, %57 : vector<16x16xf32>
    %59 = arith.mulf %33, %33 : vector<16x16xf32>
    %60 = arith.addf %58, %59 : vector<16x16xf32>
    %61 = tpu.reciprocal %60 {approx = true} : vector<16x16xf32> -> vector<16x16xf32>
    %62 = arith.mulf %50, %57 : vector<16x16xf32>
    %63 = arith.mulf %55, %33 : vector<16x16xf32>
    %64 = arith.addf %62, %63 : vector<16x16xf32>
    %65 = arith.mulf %64, %61 : vector<16x16xf32>
    %66 = arith.mulf %55, %57 : vector<16x16xf32>
    %67 = arith.mulf %50, %33 : vector<16x16xf32>
    %68 = arith.subf %66, %67 : vector<16x16xf32>
    %69 = arith.mulf %68, %61 : vector<16x16xf32>
    %cst_23 = arith.constant dense<0.000000e+00> : vector<16x128xf32>
    %70 = tpu.matmul %65, %3, %cst_23 {dimension_numbers = #tpu.dot_dimension_numbers<[1], [0], [0], [1], [0, 0, 1, 1], [], []>} : vector<16x16xf32>, vector<16x128xf32>, vector<16x128xf32> -> vector<16x128xf32>
    %cst_24 = arith.constant dense<0.000000e+00> : vector<16x128xf32>
    %71 = tpu.matmul %69, %3, %cst_24 {dimension_numbers = #tpu.dot_dimension_numbers<[1], [0], [0], [1], [0, 0, 1, 1], [], []>} : vector<16x16xf32>, vector<16x128xf32>, vector<16x128xf32> -> vector<16x128xf32>
    %72 = arith.mulf %70, %0 : vector<16x128xf32>
    %73 = arith.mulf %71, %1 : vector<16x128xf32>
    %74 = arith.subf %72, %73 : vector<16x128xf32>
    %c0_25 = arith.constant 0 : index
    %c0_26 = arith.constant 0 : index
    %75 = vector.load %arg5[%c0_25, %c0_26] : memref<16x128xf32, #tpu.memory_space<vmem>>, vector<16x128xf32>
    tpu.vector_store %arg5[%c0_25, %c0_26], %74 {strides = array<i32>} : memref<16x128xf32, #tpu.memory_space<vmem>>, vector<16x128xf32>,
    %76 = arith.mulf %70, %1 : vector<16x128xf32>
    %77 = arith.mulf %71, %0 : vector<16x128xf32>
    %78 = arith.addf %76, %77 : vector<16x128xf32>
    %c0_27 = arith.constant 0 : index
    %c0_28 = arith.constant 0 : index
    %79 = vector.load %arg6[%c0_27, %c0_28] : memref<16x128xf32, #tpu.memory_space<vmem>>, vector<16x128xf32>
    tpu.vector_store %arg6[%c0_27, %c0_28], %78 {strides = array<i32>} : memref<16x128xf32, #tpu.memory_space<vmem>>, vector<16x128xf32>,
    return
  }
  func.func @transform_0(%arg0: i32) -> (i32, i32) {
    %c0_i32 = arith.constant 0 : i32
    %c0_i32_0 = arith.constant 0 : i32
    return %arg0, %c0_i32 : i32, i32
  }
  func.func @transform_1(%arg0: i32) -> (i32, i32) {
    %c0_i32 = arith.constant 0 : i32
    %c0_i32_0 = arith.constant 0 : i32
    return %arg0, %c0_i32 : i32, i32
  }
  func.func @transform_2(%arg0: i32) -> (i32, i32) {
    %c0_i32 = arith.constant 0 : i32
    %c0_i32_0 = arith.constant 0 : i32
    %c0_i32_1 = arith.constant 0 : i32
    return %c0_i32, %c0_i32_0 : i32, i32
  }
  func.func @transform_3(%arg0: i32) -> (i32, i32) {
    %c0_i32 = arith.constant 0 : i32
    %c0_i32_0 = arith.constant 0 : i32
    %c0_i32_1 = arith.constant 0 : i32
    return %c0_i32, %c0_i32_0 : i32, i32
  }
  func.func @transform_4(%arg0: i32) -> (i32, i32) {
    %c0_i32 = arith.constant 0 : i32
    %c0_i32_0 = arith.constant 0 : i32
    return %arg0, %c0_i32 : i32, i32
  }
  func.func @transform_5(%arg0: i32) -> (i32, i32) {
    %c0_i32 = arith.constant 0 : i32
    %c0_i32_0 = arith.constant 0 : i32
    return %arg0, %c0_i32 : i32, i32
  }
}

</mosaic_0001>

<llo_original>
// kernel: custom-call
$region0: #{custom-call}
  %s0 = inlined_call_operand.vmem [shape: f32[2,196,8], index: 0, kind: input, shape index: {}]
  %s1 = inlined_call_operand.vmem [shape: f32[2,196,8], index: 1, kind: input, shape index: {}]
  %s2 = inlined_call_operand.vmem [shape: c64[2,196,8], index: 2, kind: output, shape index: {}]
  %s4 = scalar_lea.vmem %s2, 400
  %v5 = vld [vmem:[%s0] sm:$0xff]
  %6 = vst [vmem:[%s2] sm:$0xff] %v5
  %s7 = scalar_lea.vmem %s2, 8
  %s8 = scalar_lea.vmem %s0, 8
  %v9 = vld [vmem:[%s8] sm:$0xff]
  %10 = vst [vmem:[%s7] sm:$0xff] %v9
  %s11 = scalar_lea.vmem %s2, 16
  %s12 = scalar_lea.vmem %s0, 16
  %v13 = vld [vmem:[%s12] sm:$0xff]
  %14 = vst [vmem:[%s11] sm:$0xff] %v13
  %s15 = scalar_lea.vmem %s2, 24
  %s16 = scalar_lea.vmem %s0, 24
  %v17 = vld [vmem:[%s16] sm:$0xff]
  %18 = vst [vmem:[%s15] sm:$0xff] %v17
  %s19 = scalar_lea.vmem %s2, 32
  %s20 = scalar_lea.vmem %s0, 32
  %v21 = vld [vmem:[%s20] sm:$0xff]
  %22 = vst [vmem:[%s19] sm:$0xff] %v21
  %s23 = scalar_lea.vmem %s2, 40
  %s24 = scalar_lea.vmem %s0, 40
  %v25 = vld [vmem:[%s24] sm:$0xff]
  %26 = vst [vmem:[%s23] sm:$0xff] %v25
  %s27 = scalar_lea.vmem %s2, 48
  %s28 = scalar_lea.vmem %s0, 48
  %v29 = vld [vmem:[%s28] sm:$0xff]
  %30 = vst [vmem:[%s27] sm:$0xff] %v29
  %s31 = scalar_lea.vmem %s2, 56
  %s32 = scalar_lea.vmem %s0, 56
  %v33 = vld [vmem:[%s32] sm:$0xff]
  %34 = vst [vmem:[%s31] sm:$0xff] %v33
  %s35 = scalar_lea.vmem %s2, 64
  %s36 = scalar_lea.vmem %s0, 64
  %v37 = vld [vmem:[%s36] sm:$0xff]
  %38 = vst [vmem:[%s35] sm:$0xff] %v37
  %s39 = scalar_lea.vmem %s2, 72
  %s40 = scalar_lea.vmem %s0, 72
  %v41 = vld [vmem:[%s40] sm:$0xff]
  %42 = vst [vmem:[%s39] sm:$0xff] %v41
  %s43 = scalar_lea.vmem %s2, 80
  %s44 = scalar_lea.vmem %s0, 80
  %v45 = vld [vmem:[%s44] sm:$0xff]
  %46 = vst [vmem:[%s43] sm:$0xff] %v45
  %s47 = scalar_lea.vmem %s2, 88
  %s48 = scalar_lea.vmem %s0, 88
  %v49 = vld [vmem:[%s48] sm:$0xff]
  %50 = vst [vmem:[%s47] sm:$0xff] %v49
  %s51 = scalar_lea.vmem %s2, 96
  %s52 = scalar_lea.vmem %s0, 96
  %v53 = vld [vmem:[%s52] sm:$0xff]
  %54 = vst [vmem:[%s51] sm:$0xff] %v53
  %s55 = scalar_lea.vmem %s2, 104
  %s56 = scalar_lea.vmem %s0, 104
  %v57 = vld [vmem:[%s56] sm:$0xff]
  %58 = vst [vmem:[%s55] sm:$0xff] %v57
  %s59 = scalar_lea.vmem %s2, 112
  %s60 = scalar_lea.vmem %s0, 112
  %v61 = vld [vmem:[%s60] sm:$0xff]
  %62 = vst [vmem:[%s59] sm:$0xff] %v61
  %s63 = scalar_lea.vmem %s2, 120
  %s64 = scalar_lea.vmem %s0, 120
  %v65 = vld [vmem:[%s64] sm:$0xff]
  %66 = vst [vmem:[%s63] sm:$0xff] %v65
  %s67 = scalar_lea.vmem %s2, 128
  %s68 = scalar_lea.vmem %s0, 128
  %v69 = vld [vmem:[%s68] sm:$0xff]
  %70 = vst [vmem:[%s67] sm:$0xff] %v69
  %s71 = scalar_lea.vmem %s2, 136
  %s72 = scalar_lea.vmem %s0, 136
  %v73 = vld [vmem:[%s72] sm:$0xff]
  %74 = vst [vmem:[%s71] sm:$0xff] %v73
  %s75 = scalar_lea.vmem %s2, 144
  %s76 = scalar_lea.vmem %s0, 144
  %v77 = vld [vmem:[%s76] sm:$0xff]
  %78 = vst [vmem:[%s75] sm:$0xff] %v77
  %s79 = scalar_lea.vmem %s2, 152
  %s80 = scalar_lea.vmem %s0, 152
  %v81 = vld [vmem:[%s80] sm:$0xff]
  %82 = vst [vmem:[%s79] sm:$0xff] %v81
  %s83 = scalar_lea.vmem %s2, 160
  %s84 = scalar_lea.vmem %s0, 160
  %v85 = vld [vmem:[%s84] sm:$0xff]
  %86 = vst [vmem:[%s83] sm:$0xff] %v85
  %s87 = scalar_lea.vmem %s2, 168
  %s88 = scalar_lea.vmem %s0, 168
  %v89 = vld [vmem:[%s88] sm:$0xff]
  %90 = vst [vmem:[%s87] sm:$0xff] %v89
  %s91 = scalar_lea.vmem %s2, 176
  %s92 = scalar_lea.vmem %s0, 176
  %v93 = vld [vmem:[%s92] sm:$0xff]
  %94 = vst [vmem:[%s91] sm:$0xff] %v93
  %s95 = scalar_lea.vmem %s2, 184
  %s96 = scalar_lea.vmem %s0, 184
  %v97 = vld [vmem:[%s96] sm:$0xff]
  %98 = vst [vmem:[%s95] sm:$0xff] %v97
  %s99 = scalar_lea.vmem %s2, 192
  %s100 = scalar_lea.vmem %s0, 192
  %v101 = vld [vmem:[%s100] sm:$0xff]
  %102 = vst [vmem:[%s99] sm:$0xff] %v101
  %s103 = scalar_lea.vmem %s2, 200
  %s104 = scalar_lea.vmem %s0, 200
  %v105 = vld [vmem:[%s104] sm:$0xff]
  %106 = vst [vmem:[%s103] sm:$0xff] %v105
  %s107 = scalar_lea.vmem %s2, 208
  %s108 = scalar_lea.vmem %s0, 208
  %v109 = vld [vmem:[%s108] sm:$0xff]
  %110 = vst [vmem:[%s107] sm:$0xff] %v109
  %s111 = scalar_lea.vmem %s2, 216
  %s112 = scalar_lea.vmem %s0, 216
  %v113 = vld [vmem:[%s112] sm:$0xff]
  %114 = vst [vmem:[%s111] sm:$0xff] %v113
  %s115 = scalar_lea.vmem %s2, 224
  %s116 = scalar_lea.vmem %s0, 224
  %v117 = vld [vmem:[%s116] sm:$0xff]
  %118 = vst [vmem:[%s115] sm:$0xff] %v117
  %s119 = scalar_lea.vmem %s2, 232
  %s120 = scalar_lea.vmem %s0, 232
  %v121 = vld [vmem:[%s120] sm:$0xff]
  %122 = vst [vmem:[%s119] sm:$0xff] %v121
  %s123 = scalar_lea.vmem %s2, 240
  %s124 = scalar_lea.vmem %s0, 240
  %v125 = vld [vmem:[%s124] sm:$0xff]
  %126 = vst [vmem:[%s123] sm:$0xff] %v125
  %s127 = scalar_lea.vmem %s2, 248
  %s128 = scalar_lea.vmem %s0, 248
  %v129 = vld [vmem:[%s128] sm:$0xff]
  %130 = vst [vmem:[%s127] sm:$0xff] %v129
  %s131 = scalar_lea.vmem %s2, 256
  %s132 = scalar_lea.vmem %s0, 256
  %v133 = vld [vmem:[%s132] sm:$0xff]
  %134 = vst [vmem:[%s131] sm:$0xff] %v133
  %s135 = scalar_lea.vmem %s2, 264
  %s136 = scalar_lea.vmem %s0, 264
  %v137 = vld [vmem:[%s136] sm:$0xff]
  %138 = vst [vmem:[%s135] sm:$0xff] %v137
  %s139 = scalar_lea.vmem %s2, 272
  %s140 = scalar_lea.vmem %s0, 272
  %v141 = vld [vmem:[%s140] sm:$0xff]
  %142 = vst [vmem:[%s139] sm:$0xff] %v141
  %s143 = scalar_lea.vmem %s2, 280
  %s144 = scalar_lea.vmem %s0, 280
  %v145 = vld [vmem:[%s144] sm:$0xff]
  %146 = vst [vmem:[%s143] sm:$0xff] %v145
  %s147 = scalar_lea.vmem %s2, 288
  %s148 = scalar_lea.vmem %s0, 288
  %v149 = vld [vmem:[%s148] sm:$0xff]
  %150 = vst [vmem:[%s147] sm:$0xff] %v149
  %s151 = scalar_lea.vmem %s2, 296
  %s152 = scalar_lea.vmem %s0, 296
  %v153 = vld [vmem:[%s152] sm:$0xff]
  %154 = vst [vmem:[%s151] sm:$0xff] %v153
  %s155 = scalar_lea.vmem %s2, 304
  %s156 = scalar_lea.vmem %s0, 304
  %v157 = vld [vmem:[%s156] sm:$0xff]
  %158 = vst [vmem:[%s155] sm:$0xff] %v157
  %s159 = scalar_lea.vmem %s2, 312
  %s160 = scalar_lea.vmem %s0, 312
  %v161 = vld [vmem:[%s160] sm:$0xff]
  %162 = vst [vmem:[%s159] sm:$0xff] %v161
  %s163 = scalar_lea.vmem %s2, 320
  %s164 = scalar_lea.vmem %s0, 320
  %v165 = vld [vmem:[%s164] sm:$0xff]
  %166 = vst [vmem:[%s163] sm:$0xff] %v165
  %s167 = scalar_lea.vmem %s2, 328
  %s168 = scalar_lea.vmem %s0, 328
  %v169 = vld [vmem:[%s168] sm:$0xff]
  %170 = vst [vmem:[%s167] sm:$0xff] %v169
  %s171 = scalar_lea.vmem %s2, 336
  %s172 = scalar_lea.vmem %s0, 336
  %v173 = vld [vmem:[%s172] sm:$0xff]
  %174 = vst [vmem:[%s171] sm:$0xff] %v173
  %s175 = scalar_lea.vmem %s2, 344
  %s176 = scalar_lea.vmem %s0, 344
  %v177 = vld [vmem:[%s176] sm:$0xff]
  %178 = vst [vmem:[%s175] sm:$0xff] %v177
  %s179 = scalar_lea.vmem %s2, 352
  %s180 = scalar_lea.vmem %s0, 352
  %v181 = vld [vmem:[%s180] sm:$0xff]
  %182 = vst [vmem:[%s179] sm:$0xff] %v181
  %s183 = scalar_lea.vmem %s2, 360
  %s184 = scalar_lea.vmem %s0, 360
  %v185 = vld [vmem:[%s184] sm:$0xff]
  %186 = vst [vmem:[%s183] sm:$0xff] %v185
  %s187 = scalar_lea.vmem %s2, 368
  %s188 = scalar_lea.vmem %s0, 368
  %v189 = vld [vmem:[%s188] sm:$0xff]
  %190 = vst [vmem:[%s187] sm:$0xff] %v189
  %s191 = scalar_lea.vmem %s2, 376
  %s192 = scalar_lea.vmem %s0, 376
  %v193 = vld [vmem:[%s192] sm:$0xff]
  %194 = vst [vmem:[%s191] sm:$0xff] %v193
  %s195 = scalar_lea.vmem %s2, 384
  %s196 = scalar_lea.vmem %s0, 384
  %v197 = vld [vmem:[%s196] sm:$0xff]
  %198 = vst [vmem:[%s195] sm:$0xff] %v197
  %s199 = scalar_lea.vmem %s2, 392
  %s200 = scalar_lea.vmem %s0, 392
  %v201 = vld [vmem:[%s200] sm:$0xff]
  %202 = vst [vmem:[%s199] sm:$0xff] %v201
  %v203 = vld [vmem:[%s1] sm:$0xff]
  %204 = vst [vmem:[%s4] sm:$0xff] %v203
  %s205 = scalar_lea.vmem %s4, 8
  %s206 = scalar_lea.vmem %s1, 8
  %v207 = vld [vmem:[%s206] sm:$0xff]
  %208 = vst [vmem:[%s205] sm:$0xff] %v207
  %s209 = scalar_lea.vmem %s4, 16
  %s210 = scalar_lea.vmem %s1, 16
  %v211 = vld [vmem:[%s210] sm:$0xff]
  %212 = vst [vmem:[%s209] sm:$0xff] %v211
  %s213 = scalar_lea.vmem %s4, 24
  %s214 = scalar_lea.vmem %s1, 24
  %v215 = vld [vmem:[%s214] sm:$0xff]
  %216 = vst [vmem:[%s213] sm:$0xff] %v215
  %s217 = scalar_lea.vmem %s4, 32
  %s218 = scalar_lea.vmem %s1, 32
  %v219 = vld [vmem:[%s218] sm:$0xff]
  %220 = vst [vmem:[%s217] sm:$0xff] %v219
  %s221 = scalar_lea.vmem %s4, 40
  %s222 = scalar_lea.vmem %s1, 40
  %v223 = vld [vmem:[%s222] sm:$0xff]
  %224 = vst [vmem:[%s221] sm:$0xff] %v223
  %s225 = scalar_lea.vmem %s4, 48
  %s226 = scalar_lea.vmem %s1, 48
  %v227 = vld [vmem:[%s226] sm:$0xff]
  %228 = vst [vmem:[%s225] sm:$0xff] %v227
  %s229 = scalar_lea.vmem %s4, 56
  %s230 = scalar_lea.vmem %s1, 56
  %v231 = vld [vmem:[%s230] sm:$0xff]
  %232 = vst [vmem:[%s229] sm:$0xff] %v231
  %s233 = scalar_lea.vmem %s4, 64
  %s234 = scalar_lea.vmem %s1, 64
  %v235 = vld [vmem:[%s234] sm:$0xff]
  %236 = vst [vmem:[%s233] sm:$0xff] %v235
  %s237 = scalar_lea.vmem %s4, 72
  %s238 = scalar_lea.vmem %s1, 72
  %v239 = vld [vmem:[%s238] sm:$0xff]
  %240 = vst [vmem:[%s237] sm:$0xff] %v239
  %s241 = scalar_lea.vmem %s4, 80
  %s242 = scalar_lea.vmem %s1, 80
  %v243 = vld [vmem:[%s242] sm:$0xff]
  %244 = vst [vmem:[%s241] sm:$0xff] %v243
  %s245 = scalar_lea.vmem %s4, 88
  %s246 = scalar_lea.vmem %s1, 88
  %v247 = vld [vmem:[%s246] sm:$0xff]
  %248 = vst [vmem:[%s245] sm:$0xff] %v247
  %s249 = scalar_lea.vmem %s4, 96
  %s250 = scalar_lea.vmem %s1, 96
  %v251 = vld [vmem:[%s250] sm:$0xff]
  %252 = vst [vmem:[%s249] sm:$0xff] %v251
  %s253 = scalar_lea.vmem %s4, 104
  %s254 = scalar_lea.vmem %s1, 104
  %v255 = vld [vmem:[%s254] sm:$0xff]
  %256 = vst [vmem:[%s253] sm:$0xff] %v255
  %s257 = scalar_lea.vmem %s4, 112
  %s258 = scalar_lea.vmem %s1, 112
  %v259 = vld [vmem:[%s258] sm:$0xff]
  %260 = vst [vmem:[%s257] sm:$0xff] %v259
  %s261 = scalar_lea.vmem %s4, 120
  %s262 = scalar_lea.vmem %s1, 120
  %v263 = vld [vmem:[%s262] sm:$0xff]
  %264 = vst [vmem:[%s261] sm:$0xff] %v263
  %s265 = scalar_lea.vmem %s4, 128
  %s266 = scalar_lea.vmem %s1, 128
  %v267 = vld [vmem:[%s266] sm:$0xff]
  %268 = vst [vmem:[%s265] sm:$0xff] %v267
  %s269 = scalar_lea.vmem %s4, 136
  %s270 = scalar_lea.vmem %s1, 136
  %v271 = vld [vmem:[%s270] sm:$0xff]
  %272 = vst [vmem:[%s269] sm:$0xff] %v271
  %s273 = scalar_lea.vmem %s4, 144
  %s274 = scalar_lea.vmem %s1, 144
  %v275 = vld [vmem:[%s274] sm:$0xff]
  %276 = vst [vmem:[%s273] sm:$0xff] %v275
  %s277 = scalar_lea.vmem %s4, 152
  %s278 = scalar_lea.vmem %s1, 152
  %v279 = vld [vmem:[%s278] sm:$0xff]
  %280 = vst [vmem:[%s277] sm:$0xff] %v279
  %s281 = scalar_lea.vmem %s4, 160
  %s282 = scalar_lea.vmem %s1, 160
  %v283 = vld [vmem:[%s282] sm:$0xff]
  %284 = vst [vmem:[%s281] sm:$0xff] %v283
  %s285 = scalar_lea.vmem %s4, 168
  %s286 = scalar_lea.vmem %s1, 168
  %v287 = vld [vmem:[%s286] sm:$0xff]
  %288 = vst [vmem:[%s285] sm:$0xff] %v287
  %s289 = scalar_lea.vmem %s4, 176
  %s290 = scalar_lea.vmem %s1, 176
  %v291 = vld [vmem:[%s290] sm:$0xff]
  %292 = vst [vmem:[%s289] sm:$0xff] %v291
  %s293 = scalar_lea.vmem %s4, 184
  %s294 = scalar_lea.vmem %s1, 184
  %v295 = vld [vmem:[%s294] sm:$0xff]
  %296 = vst [vmem:[%s293] sm:$0xff] %v295
  %s297 = scalar_lea.vmem %s4, 192
  %s298 = scalar_lea.vmem %s1, 192
  %v299 = vld [vmem:[%s298] sm:$0xff]
  %300 = vst [vmem:[%s297] sm:$0xff] %v299
  %s301 = scalar_lea.vmem %s4, 200
  %s302 = scalar_lea.vmem %s1, 200
  %v303 = vld [vmem:[%s302] sm:$0xff]
  %304 = vst [vmem:[%s301] sm:$0xff] %v303
  %s305 = scalar_lea.vmem %s4, 208
  %s306 = scalar_lea.vmem %s1, 208
  %v307 = vld [vmem:[%s306] sm:$0xff]
  %308 = vst [vmem:[%s305] sm:$0xff] %v307
  %s309 = scalar_lea.vmem %s4, 216
  %s310 = scalar_lea.vmem %s1, 216
  %v311 = vld [vmem:[%s310] sm:$0xff]
  %312 = vst [vmem:[%s309] sm:$0xff] %v311
  %s313 = scalar_lea.vmem %s4, 224
  %s314 = scalar_lea.vmem %s1, 224
  %v315 = vld [vmem:[%s314] sm:$0xff]
  %316 = vst [vmem:[%s313] sm:$0xff] %v315
  %s317 = scalar_lea.vmem %s4, 232
  %s318 = scalar_lea.vmem %s1, 232
  %v319 = vld [vmem:[%s318] sm:$0xff]
  %320 = vst [vmem:[%s317] sm:$0xff] %v319
  %s321 = scalar_lea.vmem %s4, 240
  %s322 = scalar_lea.vmem %s1, 240
  %v323 = vld [vmem:[%s322] sm:$0xff]
  %324 = vst [vmem:[%s321] sm:$0xff] %v323
  %s325 = scalar_lea.vmem %s4, 248
  %s326 = scalar_lea.vmem %s1, 248
  %v327 = vld [vmem:[%s326] sm:$0xff]
  %328 = vst [vmem:[%s325] sm:$0xff] %v327
  %s329 = scalar_lea.vmem %s4, 256
  %s330 = scalar_lea.vmem %s1, 256
  %v331 = vld [vmem:[%s330] sm:$0xff]
  %332 = vst [vmem:[%s329] sm:$0xff] %v331
  %s333 = scalar_lea.vmem %s4, 264
  %s334 = scalar_lea.vmem %s1, 264
  %v335 = vld [vmem:[%s334] sm:$0xff]
  %336 = vst [vmem:[%s333] sm:$0xff] %v335
  %s337 = scalar_lea.vmem %s4, 272
  %s338 = scalar_lea.vmem %s1, 272
  %v339 = vld [vmem:[%s338] sm:$0xff]
  %340 = vst [vmem:[%s337] sm:$0xff] %v339
  %s341 = scalar_lea.vmem %s4, 280
  %s342 = scalar_lea.vmem %s1, 280
  %v343 = vld [vmem:[%s342] sm:$0xff]
  %344 = vst [vmem:[%s341] sm:$0xff] %v343
  %s345 = scalar_lea.vmem %s4, 288
  %s346 = scalar_lea.vmem %s1, 288
  %v347 = vld [vmem:[%s346] sm:$0xff]
  %348 = vst [vmem:[%s345] sm:$0xff] %v347
  %s349 = scalar_lea.vmem %s4, 296
  %s350 = scalar_lea.vmem %s1, 296
  %v351 = vld [vmem:[%s350] sm:$0xff]
  %352 = vst [vmem:[%s349] sm:$0xff] %v351
  %s353 = scalar_lea.vmem %s4, 304
  %s354 = scalar_lea.vmem %s1, 304
  %v355 = vld [vmem:[%s354] sm:$0xff]
  %356 = vst [vmem:[%s353] sm:$0xff] %v355
  %s357 = scalar_lea.vmem %s4, 312
  %s358 = scalar_lea.vmem %s1, 312
  %v359 = vld [vmem:[%s358] sm:$0xff]
  %360 = vst [vmem:[%s357] sm:$0xff] %v359
  %s361 = scalar_lea.vmem %s4, 320
  %s362 = scalar_lea.vmem %s1, 320
  %v363 = vld [vmem:[%s362] sm:$0xff]
  %364 = vst [vmem:[%s361] sm:$0xff] %v363
  %s365 = scalar_lea.vmem %s4, 328
  %s366 = scalar_lea.vmem %s1, 328
  %v367 = vld [vmem:[%s366] sm:$0xff]
  %368 = vst [vmem:[%s365] sm:$0xff] %v367
  %s369 = scalar_lea.vmem %s4, 336
  %s370 = scalar_lea.vmem %s1, 336
  %v371 = vld [vmem:[%s370] sm:$0xff]
  %372 = vst [vmem:[%s369] sm:$0xff] %v371
  %s373 = scalar_lea.vmem %s4, 344
  %s374 = scalar_lea.vmem %s1, 344
  %v375 = vld [vmem:[%s374] sm:$0xff]
  %376 = vst [vmem:[%s373] sm:$0xff] %v375
  %s377 = scalar_lea.vmem %s4, 352
  %s378 = scalar_lea.vmem %s1, 352
  %v379 = vld [vmem:[%s378] sm:$0xff]
  %380 = vst [vmem:[%s377] sm:$0xff] %v379
  %s381 = scalar_lea.vmem %s4, 360
  %s382 = scalar_lea.vmem %s1, 360
  %v383 = vld [vmem:[%s382] sm:$0xff]
  %384 = vst [vmem:[%s381] sm:$0xff] %v383
  %s385 = scalar_lea.vmem %s4, 368
  %s386 = scalar_lea.vmem %s1, 368
  %v387 = vld [vmem:[%s386] sm:$0xff]
  %388 = vst [vmem:[%s385] sm:$0xff] %v387
  %s389 = scalar_lea.vmem %s4, 376
  %s390 = scalar_lea.vmem %s1, 376
  %v391 = vld [vmem:[%s390] sm:$0xff]
  %392 = vst [vmem:[%s389] sm:$0xff] %v391
  %s393 = scalar_lea.vmem %s4, 384
  %s394 = scalar_lea.vmem %s1, 384
  %v395 = vld [vmem:[%s394] sm:$0xff]
  %396 = vst [vmem:[%s393] sm:$0xff] %v395
  %s397 = scalar_lea.vmem %s4, 392
  %s398 = scalar_lea.vmem %s1, 392
  %v399 = vld [vmem:[%s398] sm:$0xff]
  %400 = vst [vmem:[%s397] sm:$0xff] %v399

// kernel: _lambda_.3
$region0: #{_lambda_.3}
  #allocation0 [shape = 'u32[]', space=smem, size = 0x4, offset = 0x4, fixed_abs, tag = 'smem constant byte address 0x4 - core index']
  #allocation1 [shape = 'u32[144,128]{1,0:T(1,128)}', space=vmem, size = 0x12000, scoped, tag = 'internal scratch']
  %s0 = inlined_call_operand.vmem [shape: f32[25,128], index: 0, kind: input, shape index: {}]
  %s1 = inlined_call_operand.vmem [shape: f32[25,128], index: 1, kind: input, shape index: {}]
  %s2 = inlined_call_operand.vmem [shape: f32[128,16], index: 2, kind: input, shape index: {}]
  %s3 = inlined_call_operand.vmem [shape: f32[16,128], index: 3, kind: input, shape index: {}]
  %s4 = inlined_call_operand.vmem [shape: f32[25,128], index: 4, kind: output, shape index: {0}]
  %s5 = inlined_call_operand.vmem [shape: f32[25,128], index: 5, kind: output, shape index: {1}]
  %6 = xla_tuple %s4, %s5
  %s7 = sld [smem:[#allocation0]]
  $region57: #{_lambda_.3} parent=0
    _
  %s9 = ssub.s32 1, %s7
  %s10 = scalar_select 0, %s9, %s7
  loop: start=0, step=1, limit=4
  $region2: #{_lambda_.3} parent=0 // loop_pre_header
    _
  $region3: #{_lambda_.3} parent=0 // loop_header
    %s12 = sphi 0, %s16
    %p13 = scmp.ge.s32.totalorder %s12, 4
    %s22 = sphi 0, %s24
    %s25 = sphi 0, %s22
    %s26 = sphi 0, %s25
    %s42 = sphi 0, %s26
    %s48 = sphi 0, %s50
    %s51 = sphi 0, %s48
    %s52 = sphi 0, %s51
    %s68 = sphi 0, %s52
    %s72 = sphi 0, %s72
    %s74 = sphi 0, %s72
    %s75 = sphi 0, %s74
    %s89 = sphi 0, %s75
    %s93 = sphi 0, %s93
    %s95 = sphi 0, %s93
    %s96 = sphi 0, %s95
    %s110 = sphi 0, %s96
    %s116 = sphi 0, %s118
    %s119 = sphi 0, %s116
    %s120 = sphi 0, %s119
    %s136 = sphi 0, %s120
    %s142 = sphi 0, %s144
    %s145 = sphi 0, %s142
    %s146 = sphi 0, %s145
    %s162 = sphi 0, %s146
  $region4: #{_lambda_.3} parent=0 // loop_header_branch
    %15 = sbr.rel (%p13) target = $region8
  $region5: #{_lambda_.3} parent=0 // loop_body
    %s17 = ssub.s32 %s12, 1
    %s18 = ssub.s32 %s12, 2
    %s19 = sadd.s32 %s12, 1
    %s20 = ssub.s32 %s12, %s19
    %p21 = scmp.eq.s32.totalorder %s20, 0
    %s23 = sadd.s32 %s22, 1
    %s24 = scalar_select %p21, %s22, %s23
    %p27 = pneg %p21
    %p28 = scmp.eq.s32.totalorder %s12, 1
    %p29 = por %p27, %p28
    %p30 = scmp.ne.s32.totalorder %s22, %s25
    %p31 = scmp.eq.s32.totalorder %s12, 0
    %p32 = por %p30, %p31
    %p33 = scmp.ne.s32.totalorder %s22, %s25
    %p34 = scmp.eq.s32.totalorder %s17, 1
    %p35 = por %p33, %p34
    %p36 = scmp.ne.s32.totalorder %s25, %s26
    %p37 = scmp.eq.s32.totalorder %s17, 0
    %p38 = por %p36, %p37
    %p39 = scmp.ne.s32.totalorder %s25, %s26
    %p40 = scmp.eq.s32.totalorder %s18, 1
    %p41 = por %p39, %p40
    %p43 = scmp.ne.s32.totalorder %s26, %s42
    %p44 = scmp.eq.s32.totalorder %s18, 0
    %p45 = por %p43, %p44
    %s46 = ssub.s32 %s12, %s19
    %p47 = scmp.eq.s32.totalorder %s46, 0
    %s49 = sadd.s32 %s48, 1
    %s50 = scalar_select %p47, %s48, %s49
    %p53 = pneg %p47
    %p54 = scmp.eq.s32.totalorder %s12, 1
    %p55 = por %p53, %p54
    %p56 = scmp.ne.s32.totalorder %s48, %s51
    %p57 = scmp.eq.s32.totalorder %s12, 0
    %p58 = por %p56, %p57
    %p59 = scmp.ne.s32.totalorder %s48, %s51
    %p60 = scmp.eq.s32.totalorder %s17, 1
    %p61 = por %p59, %p60
    %p62 = scmp.ne.s32.totalorder %s51, %s52
    %p63 = scmp.eq.s32.totalorder %s17, 0
    %p64 = por %p62, %p63
    %p65 = scmp.ne.s32.totalorder %s51, %s52
    %p66 = scmp.eq.s32.totalorder %s18, 1
    %p67 = por %p65, %p66
    %p69 = scmp.ne.s32.totalorder %s52, %s68
    %p70 = scmp.eq.s32.totalorder %s18, 0
    %p71 = por %p69, %p70
    %s73 = sadd.s32 %s72, 1
    %p76 = scmp.eq.s32.totalorder %s12, 1
    %p77 = scmp.ne.s32.totalorder %s72, %s74
    %p78 = scmp.eq.s32.totalorder %s12, 0
    %p79 = por %p77, %p78
    %p80 = scmp.ne.s32.totalorder %s72, %s74
    %p81 = scmp.eq.s32.totalorder %s17, 1
    %p82 = por %p80, %p81
    %p83 = scmp.ne.s32.totalorder %s74, %s75
    %p84 = scmp.eq.s32.totalorder %s17, 0
    %p85 = por %p83, %p84
    %p86 = scmp.ne.s32.totalorder %s74, %s75
    %p87 = scmp.eq.s32.totalorder %s18, 1
    %p88 = por %p86, %p87
    %p90 = scmp.ne.s32.totalorder %s75, %s89
    %p91 = scmp.eq.s32.totalorder %s18, 0
    %p92 = por %p90, %p91
    %s94 = sadd.s32 %s93, 1
    %p97 = scmp.eq.s32.totalorder %s12, 1
    %p98 = scmp.ne.s32.totalorder %s93, %s95
    %p99 = scmp.eq.s32.totalorder %s12, 0
    %p100 = por %p98, %p99
    %p101 = scmp.ne.s32.totalorder %s93, %s95
    %p102 = scmp.eq.s32.totalorder %s17, 1
    %p103 = por %p101, %p102
    %p104 = scmp.ne.s32.totalorder %s95, %s96
    %p105 = scmp.eq.s32.totalorder %s17, 0
    %p106 = por %p104, %p105
    %p107 = scmp.ne.s32.totalorder %s95, %s96
    %p108 = scmp.eq.s32.totalorder %s18, 1
    %p109 = por %p107, %p108
    %p111 = scmp.ne.s32.totalorder %s96, %s110
    %p112 = scmp.eq.s32.totalorder %s18, 0
    %p113 = por %p111, %p112
    %s114 = ssub.s32 %s12, %s19
    %p115 = scmp.eq.s32.totalorder %s114, 0
    %s117 = sadd.s32 %s116, 1
    %s118 = scalar_select %p115, %s116, %s117
    %p121 = pneg %p115
    %p122 = scmp.eq.s32.totalorder %s12, 1
    %p123 = por %p121, %p122
    %p124 = scmp.ne.s32.totalorder %s116, %s119
    %p125 = scmp.eq.s32.totalorder %s12, 0
    %p126 = por %p124, %p125
    %p127 = scmp.ne.s32.totalorder %s116, %s119
    %p128 = scmp.eq.s32.totalorder %s17, 1
    %p129 = por %p127, %p128
    %p130 = scmp.ne.s32.totalorder %s119, %s120
    %p131 = scmp.eq.s32.totalorder %s17, 0
    %p132 = por %p130, %p131
    %p133 = scmp.ne.s32.totalorder %s119, %s120
    %p134 = scmp.eq.s32.totalorder %s18, 1
    %p135 = por %p133, %p134
    %p137 = scmp.ne.s32.totalorder %s120, %s136
    %p138 = scmp.eq.s32.totalorder %s18, 0
    %p139 = por %p137, %p138
    %s140 = ssub.s32 %s12, %s19
    %p141 = scmp.eq.s32.totalorder %s140, 0
    %s143 = sadd.s32 %s142, 1
    %s144 = scalar_select %p141, %s142, %s143
    %p147 = pneg %p141
    %p148 = scmp.eq.s32.totalorder %s12, 1
    %p149 = por %p147, %p148
    %p150 = scmp.ne.s32.totalorder %s142, %s145
    %p151 = scmp.eq.s32.totalorder %s12, 0
    %p152 = por %p150, %p151
    %p153 = scmp.ne.s32.totalorder %s142, %s145
    %p154 = scmp.eq.s32.totalorder %s17, 1
    %p155 = por %p153, %p154
    %p156 = scmp.ne.s32.totalorder %s145, %s146
    %p157 = scmp.eq.s32.totalorder %s17, 0
    %p158 = por %p156, %p157
    %p159 = scmp.ne.s32.totalorder %s145, %s146
    %p160 = scmp.eq.s32.totalorder %s18, 1
    %p161 = por %p159, %p160
    %p163 = scmp.ne.s32.totalorder %s146, %s162
    %p164 = scmp.eq.s32.totalorder %s18, 0
    %p165 = por %p163, %p164
    %p166 = scmp.le.s32.totalorder 1, %s12
    %p167 = scmp.lt.s32.totalorder %s12, 3
    %p168 = pnand %p166, %p167
    %p169 = pneg %p168
    // Predicated region
    $region9: #{_lambda_.3} parent=5 // pred_check
      _
    $region10: #{_lambda_.3} parent=5 // pred_check_branch
      %171 = sbr.rel (%p168) target = $region12
    $region11: #{_lambda_.3} parent=5 // pred_region
      %s172 = ssub.s32 %s12, 1
      // Predicated region
      $region13: #{_lambda_.3} parent=11 // pred_check
        %p173 = pneg %p85
      $region14: #{_lambda_.3} parent=11 // pred_check_branch
        %175 = sbr.rel (%p173) target = $region16
      $region15: #{_lambda_.3} parent=11 // pred_region
        _
      $region16: #{_lambda_.3} parent=11 // pred_fallthru
        _
      // Predicated region
      $region17: #{_lambda_.3} parent=11 // pred_check
        %p176 = pneg %p106
      $region18: #{_lambda_.3} parent=11 // pred_check_branch
        %178 = sbr.rel (%p176) target = $region20
      $region19: #{_lambda_.3} parent=11 // pred_region
        _
      $region20: #{_lambda_.3} parent=11 // pred_fallthru
        _
    $region12: #{_lambda_.3} parent=5 // pred_fallthru
      _
    %p179 = scmp.lt.s32.totalorder %s12, 2
    // Predicated region
    $region21: #{_lambda_.3} parent=5 // pred_check
      %p180 = pneg %p179
    $region22: #{_lambda_.3} parent=5 // pred_check_branch
      %182 = sbr.rel (%p180) target = $region24
    $region23: #{_lambda_.3} parent=5 // pred_region
      // Predicated region
      $region25: #{_lambda_.3} parent=23 // pred_check
        %p183 = pneg %p32
      $region26: #{_lambda_.3} parent=23 // pred_check_branch
        %185 = sbr.rel (%p183) target = $region28
      $region27: #{_lambda_.3} parent=23 // pred_region
        %s186 = smul.u32 2, %s12
        %p187 = scmp.lt.s32.totalorder %s186, 3
        %s188 = scalar_select %p187, %s186, 3
        %s189 = smul.addr %s188, 8
        %s190 = scalar_lea.vmem %s0, %s189
        %s191 = smul.u32 2, %s12
      $region28: #{_lambda_.3} parent=23 // pred_fallthru
        _
      // Predicated region
      $region29: #{_lambda_.3} parent=23 // pred_check
        %p192 = pneg %p58
      $region30: #{_lambda_.3} parent=23 // pred_check_branch
        %194 = sbr.rel (%p192) target = $region32
      $region31: #{_lambda_.3} parent=23 // pred_region
        %s195 = smul.u32 2, %s12
        %p196 = scmp.lt.s32.totalorder %s195, 3
        %s197 = scalar_select %p196, %s195, 3
        %s198 = smul.addr %s197, 8
        %s199 = scalar_lea.vmem %s1, %s198
        %s200 = smul.u32 2, %s12
      $region32: #{_lambda_.3} parent=23 // pred_fallthru
        _
    $region24: #{_lambda_.3} parent=5 // pred_fallthru
      _
    %p201 = scmp.le.s32.totalorder 1, %s12
    %p202 = scmp.lt.s32.totalorder %s12, 3
    %p203 = pnand %p201, %p202
    %p204 = pneg %p203
    // Predicated region
    $region33: #{_lambda_.3} parent=5 // pred_check
      _
    $region34: #{_lambda_.3} parent=5 // pred_check_branch
      %206 = sbr.rel (%p203) target = $region36
    $region35: #{_lambda_.3} parent=5 // pred_region
      %s207 = ssub.s32 %s12, 1
      %s208 = smul.u32 2, %s17
      %p209 = scmp.lt.s32.totalorder %s208, 3
      %s210 = scalar_select %p209, %s208, 3
      %s211 = smul.addr %s210, 8
      %s212 = scalar_lea.vmem %s0, %s211
      %p213 = pneg %p38
      %p214 = pneg %p35
      %s215 = smul.u32 2, %s17
      %p216 = scmp.lt.s32.totalorder %s215, 3
      %s217 = scalar_select %p216, %s215, 3
      %s218 = smul.addr %s217, 8
      %s219 = scalar_lea.vmem %s1, %s218
      %p220 = pneg %p64
      %p221 = pneg %p61
      %p222 = pneg %p85
      %p223 = pneg %p82
      %p224 = pneg %p106
      %p225 = pneg %p103
      %p226 = pneg %p132
      %p227 = pneg %p129
      %s228 = smul.u32 2, %s17
      %p229 = scmp.lt.s32.totalorder %s228, 3
      %s230 = scalar_select %p229, %s228, 3
      %s231 = smul.addr %s230, 8
      %s232 = scalar_lea.vmem %s4, %s231
      %p233 = pneg %p158
      %p234 = pneg %p155
      %s235 = smul.u32 2, %s17
      %p236 = scmp.lt.s32.totalorder %s235, 3
      %s237 = scalar_select %p236, %s235, 3
      %s238 = smul.addr %s237, 8
      %s239 = scalar_lea.vmem %s5, %s238
      %s240 = smul.u32 2, %s17
      %p241 = scmp.lt.s32.totalorder %s240, 3
      %s242 = scalar_select %p241, %s240, 3
      %s243 = smul.addr %s242, 8
      %s244 = scalar_lea.vmem %s0, %s243
      %s245 = smul.u32 2, %s17
      %s246 = smul.u32 2, %s17
      %p247 = scmp.lt.s32.totalorder %s246, 3
      %s248 = scalar_select %p247, %s246, 3
      %s249 = smul.addr %s248, 8
      %s250 = scalar_lea.vmem %s1, %s249
      %s251 = smul.u32 2, %s17
      %s252 = smul.u32 2, %s17
      %p253 = scmp.lt.s32.totalorder %s252, 3
      %s254 = scalar_select %p253, %s252, 3
      %s255 = smul.addr %s254, 8
      %s256 = scalar_lea.vmem %s4, %s255
      %s257 = smul.u32 2, %s17
      %s258 = smul.u32 2, %s17
      %p259 = scmp.lt.s32.totalorder %s258, 3
      %s260 = scalar_select %p259, %s258, 3
      %s261 = smul.addr %s260, 8
      %s262 = scalar_lea.vmem %s5, %s261
      %s263 = smul.u32 2, %s17
      %v264 = vld [vmem:[%s244] sm:$0xff]
      %v265 = vld [vmem:[%s244 + $0x8] sm:$0xff]
      %v266 = vld [vmem:[%s250] sm:$0xff]
      %v267 = vld [vmem:[%s250 + $0x8] sm:$0xff]
      %v268 = vld [vmem:[%s2] sm:$0xff]
      %v269 = vld [vmem:[%s2 + $0x8] sm:$0xff]
      %v270 = vld [vmem:[%s2 + $0x10] sm:$0xff]
      %v271 = vld [vmem:[%s2 + $0x18] sm:$0xff]
      %v272 = vld [vmem:[%s2 + $0x20] sm:$0xff]
      %v273 = vld [vmem:[%s2 + $0x28] sm:$0xff]
      %v274 = vld [vmem:[%s2 + $0x30] sm:$0xff]
      %v275 = vld [vmem:[%s2 + $0x38] sm:$0xff]
      %v276 = vld [vmem:[%s2 + $0x40] sm:$0xff]
      %v277 = vld [vmem:[%s2 + $0x48] sm:$0xff]
      %v278 = vld [vmem:[%s2 + $0x50] sm:$0xff]
      %v279 = vld [vmem:[%s2 + $0x58] sm:$0xff]
      %v280 = vld [vmem:[%s2 + $0x60] sm:$0xff]
      %v281 = vld [vmem:[%s2 + $0x68] sm:$0xff]
      %v282 = vld [vmem:[%s2 + $0x70] sm:$0xff]
      %v283 = vld [vmem:[%s2 + $0x78] sm:$0xff]
      %v284 = vld [vmem:[%s3] sm:$0xff]
      %v285 = vld [vmem:[%s3 + $0x8] sm:$0xff]
      %v286 = vmul.f32 %v264, %v264
      %v287 = vmul.f32 %v265, %v265
      %v288 = vmul.f32 %v266, %v266
      %v289 = vmul.f32 %v267, %v267
      %v290 = vsub.f32 %v286, %v288
      %v291 = vsub.f32 %v287, %v289
      %292 = vmatprep.subr.mxu0 0.0
      %293 = vmatpush1.msra.mxu0 %v268
      %294 = vmatprep.subr.mxu0 0.0
      %295 = vmatpush1.msra.mxu0 %v269
      %296 = vmatprep.subr.mxu0 0.0
      %297 = vmatpush1.msra.mxu0 %v270
      %298 = vmatprep.subr.mxu0 0.0
      %299 = vmatpush1.msra.mxu0 %v271
      %300 = vmatprep.subr.mxu0 0.0
      %301 = vmatpush1.msra.mxu0 %v272
      %302 = vmatprep.subr.mxu0 0.0
      %303 = vmatpush1.msra.mxu0 %v273
      %304 = vmatprep.subr.mxu0 0.0
      %305 = vmatpush1.msra.mxu0 %v274
      %306 = vmatprep.subr.mxu0 0.0
      %307 = vmatpush1.msra.mxu0 %v275
      %308 = vmatprep.subr.mxu0 0.0
      %309 = vmatpush1.msra.mxu0 %v276
      %310 = vmatprep.subr.mxu0 0.0
      %311 = vmatpush1.msra.mxu0 %v277
      %312 = vmatprep.subr.mxu0 0.0
      %313 = vmatpush1.msra.mxu0 %v278
      %314 = vmatprep.subr.mxu0 0.0
      %315 = vmatpush1.msra.mxu0 %v279
      %316 = vmatprep.subr.mxu0 0.0
      %317 = vmatpush1.msra.mxu0 %v280
      %318 = vmatprep.subr.mxu0 0.0
      %319 = vmatpush1.msra.mxu0 %v281
      %320 = vmatprep.subr.mxu0 0.0
      %321 = vmatpush1.msra.mxu0 %v282
      %322 = vmatprep.subr.mxu0 0.0
      %323 = vmatpush1.msra.mxu0 %v283
      %324 = vmatprep.subr.mxu0 0.0
      %325 = vmatpush1.msra.mxu0 0.0
      %326 = vmatprep.subr.mxu0 0.0
      %327 = vmatpush1.msra.mxu0 0.0
      %328 = vmatprep.subr.mxu0 0.0
      %329 = vmatpush1.msra.mxu0 0.0
      %330 = vmatprep.subr.mxu0 0.0
      %331 = vmatpush1.msra.mxu0 0.0
      %332 = vmatprep.subr.mxu0 0.0
      %333 = vmatpush1.msra.mxu0 0.0
      %334 = vmatprep.subr.mxu0 0.0
      %335 = vmatpush1.msra.mxu0 0.0
      %336 = vmatprep.subr.mxu0 0.0
      %337 = vmatpush1.msra.mxu0 0.0
      %338 = vmatprep.subr.mxu0 0.0
      %339 = vmatpush1.msra.mxu0 0.0
      %340 = vmatprep.subr.mxu0 0.0
      %341 = vmatpush1.msra.mxu0 0.0
      %342 = vmatprep.subr.mxu0 0.0
      %343 = vmatpush1.msra.mxu0 0.0
      %344 = vmatprep.subr.mxu0 0.0
      %345 = vmatpush1.msra.mxu0 0.0
      %346 = vmatprep.subr.mxu0 0.0
      %347 = vmatpush1.msra.mxu0 0.0
      %348 = vmatprep.subr.mxu0 0.0
      %349 = vmatpush1.msra.mxu0 0.0
      %350 = vmatprep.subr.mxu0 0.0
      %351 = vmatpush1.msra.mxu0 0.0
      %352 = vmatprep.subr.mxu0 0.0
      %353 = vmatpush1.msra.mxu0 0.0
      %354 = vmatprep.subr.mxu0 0.0
      %355 = vmatpush1.msra.mxu0 0.0
      %356 = vmatprep.mubr.f32.mxu0 0.0
      %357 = vmatmul.mubr.f32.gmra.mrb[0].mxu0 %v290
      %v358 = vpop.f32.mrb[0].mxu0
      %v359 = vadd.f32 0.0, %v358
      %v360 = vpop.f32.mrb[0].mxu0
      %361 = vmatprep.mubr.f32.mxu0 0.0
      %362 = vmatmul.mubr.f32.gmra.mrb[0].mxu0 %v291
      %v363 = vpop.f32.mrb[0].mxu0
      %v364 = vadd.f32 0.0, %v363
      %v365 = vpop.f32.mrb[0].mxu0
      %366 = vdwg.mxu0
      %v367 = vmul.f32 %v264, 2.0
      %v368 = vmul.f32 %v265, 2.0
      %v369 = vmul.f32 %v367, %v266
      %v370 = vmul.f32 %v368, %v267
      %371 = vmatprep.subr.mxu0 0.0
      %372 = vmatpush1.msra.mxu0 %v268
      %373 = vmatprep.subr.mxu0 0.0
      %374 = vmatpush1.msra.mxu0 %v269
      %375 = vmatprep.subr.mxu0 0.0
      %376 = vmatpush1.msra.mxu0 %v270
      %377 = vmatprep.subr.mxu0 0.0
      %378 = vmatpush1.msra.mxu0 %v271
      %379 = vmatprep.subr.mxu0 0.0
      %380 = vmatpush1.msra.mxu0 %v272
      %381 = vmatprep.subr.mxu0 0.0
      %382 = vmatpush1.msra.mxu0 %v273
      %383 = vmatprep.subr.mxu0 0.0
      %384 = vmatpush1.msra.mxu0 %v274
      %385 = vmatprep.subr.mxu0 0.0
      %386 = vmatpush1.msra.mxu0 %v275
      %387 = vmatprep.subr.mxu0 0.0
      %388 = vmatpush1.msra.mxu0 %v276
      %389 = vmatprep.subr.mxu0 0.0
      %390 = vmatpush1.msra.mxu0 %v277
      %391 = vmatprep.subr.mxu0 0.0
      %392 = vmatpush1.msra.mxu0 %v278
      %393 = vmatprep.subr.mxu0 0.0
      %394 = vmatpush1.msra.mxu0 %v279
      %395 = vmatprep.subr.mxu0 0.0
      %396 = vmatpush1.msra.mxu0 %v280
      %397 = vmatprep.subr.mxu0 0.0
      %398 = vmatpush1.msra.mxu0 %v281
      %399 = vmatprep.subr.mxu0 0.0
      %400 = vmatpush1.msra.mxu0 %v282
      %401 = vmatprep.subr.mxu0 0.0
      %402 = vmatpush1.msra.mxu0 %v283
      %403 = vmatprep.subr.mxu0 0.0
      %404 = vmatpush1.msra.mxu0 0.0
      %405 = vmatprep.subr.mxu0 0.0
      %406 = vmatpush1.msra.mxu0 0.0
      %407 = vmatprep.subr.mxu0 0.0
      %408 = vmatpush1.msra.mxu0 0.0
      %409 = vmatprep.subr.mxu0 0.0
      %410 = vmatpush1.msra.mxu0 0.0
      %411 = vmatprep.subr.mxu0 0.0
      %412 = vmatpush1.msra.mxu0 0.0
      %413 = vmatprep.subr.mxu0 0.0
      %414 = vmatpush1.msra.mxu0 0.0
      %415 = vmatprep.subr.mxu0 0.0
      %416 = vmatpush1.msra.mxu0 0.0
      %417 = vmatprep.subr.mxu0 0.0
      %418 = vmatpush1.msra.mxu0 0.0
      %419 = vmatprep.subr.mxu0 0.0
      %420 = vmatpush1.msra.mxu0 0.0
      %421 = vmatprep.subr.mxu0 0.0
      %422 = vmatpush1.msra.mxu0 0.0
      %423 = vmatprep.subr.mxu0 0.0
      %424 = vmatpush1.msra.mxu0 0.0
      %425 = vmatprep.subr.mxu0 0.0
      %426 = vmatpush1.msra.mxu0 0.0
      %427 = vmatprep.subr.mxu0 0.0
      %428 = vmatpush1.msra.mxu0 0.0
      %429 = vmatprep.subr.mxu0 0.0
      %430 = vmatpush1.msra.mxu0 0.0
      %431 = vmatprep.subr.mxu0 0.0
      %432 = vmatpush1.msra.mxu0 0.0
      %433 = vmatprep.subr.mxu0 0.0
      %434 = vmatpush1.msra.mxu0 0.0
      %435 = vmatprep.mubr.f32.mxu0 0.0
      %436 = vmatmul.mubr.f32.gmra.mrb[0].mxu0 %v369
      %v437 = vpop.f32.mrb[0].mxu0
      %v438 = vadd.f32 0.0, %v437
      %v439 = vpop.f32.mrb[0].mxu0
      %440 = vmatprep.mubr.f32.mxu0 0.0
      %441 = vmatmul.mubr.f32.gmra.mrb[0].mxu0 %v370
      %v442 = vpop.f32.mrb[0].mxu0
      %v443 = vadd.f32 0.0, %v442
      %v444 = vpop.f32.mrb[0].mxu0
      %445 = vdwg.mxu0
      %v446 = vmul.f32 %v359, %v359
      %v447 = vmul.f32 %v364, %v364
      %v448 = vmul.f32 %v438, %v438
      %v449 = vmul.f32 %v443, %v443
      %v450 = vadd.f32 %v446, %v448
      %v451 = vadd.f32 %v447, %v449
      %v452 = vrsqrt.pop %v450
      %v453 = vmul.f32 %v450, %v452
      %vm454 = vcmp.eq.f32.partialorder %v450, inf
      %v455 = vsel %vm454, %v450, %v453
      %vm456 = vcmp.eq.f32.partialorder %v450, 0.0
      %v457 = vand.u32 %v450, 2147483648
      %v458 = vsel %vm456, %v457, %v455
      %v459 = vrsqrt.pop %v451
      %v460 = vmul.f32 %v451, %v459
      %vm461 = vcmp.eq.f32.partialorder %v451, inf
      %v462 = vsel %vm461, %v451, %v460
      %vm463 = vcmp.eq.f32.partialorder %v451, 0.0
      %v464 = vand.u32 %v451, 2147483648
      %v465 = vsel %vm463, %v464, %v462
      %v466 = vadd.f32 %v458, %v359
      %v467 = vadd.f32 %v465, %v364
      %v468 = vmul.f32 %v466, 0.5
      %v469 = vmul.f32 %v467, 0.5
      %v470 = vmax.f32 %v468, 0.0
      %v471 = vmax.f32 %v469, 0.0
      %v472 = vrsqrt.pop %v470
      %v473 = vmul.f32 %v470, %v472
      %vm474 = vcmp.eq.f32.partialorder %v470, inf
      %v475 = vsel %vm474, %v470, %v473
      %vm476 = vcmp.eq.f32.partialorder %v470, 0.0
      %v477 = vand.u32 %v470, 2147483648
      %v478 = vsel %vm476, %v477, %v475
      %v479 = vrsqrt.pop %v471
      %v480 = vmul.f32 %v471, %v479
      %vm481 = vcmp.eq.f32.partialorder %v471, inf
      %v482 = vsel %vm481, %v471, %v480
      %vm483 = vcmp.eq.f32.partialorder %v471, 0.0
      %v484 = vand.u32 %v471, 2147483648
      %v485 = vsel %vm483, %v484, %v482
      %vm486 = vcmp.ge.f32.partialorder %v438, 0.0
      %vm487 = vcmp.ge.f32.partialorder %v443, 0.0
      %v488 = vsel %vm486, 1.0, -1.0
      %v489 = vsel %vm487, 1.0, -1.0
      %v490 = vsub.f32 %v458, %v359
      %v491 = vsub.f32 %v465, %v364
      %v492 = vmul.f32 %v490, 0.5
      %v493 = vmul.f32 %v491, 0.5
      %v494 = vmax.f32 %v492, 0.0
      %v495 = vmax.f32 %v493, 0.0
      %v496 = vrsqrt.pop %v494
      %v497 = vmul.f32 %v494, %v496
      %vm498 = vcmp.eq.f32.partialorder %v494, inf
      %v499 = vsel %vm498, %v494, %v497
      %vm500 = vcmp.eq.f32.partialorder %v494, 0.0
      %v501 = vand.u32 %v494, 2147483648
      %v502 = vsel %vm500, %v501, %v499
      %v503 = vrsqrt.pop %v495
      %v504 = vmul.f32 %v495, %v503
      %vm505 = vcmp.eq.f32.partialorder %v495, inf
      %v506 = vsel %vm505, %v495, %v504
      %vm507 = vcmp.eq.f32.partialorder %v495, 0.0
      %v508 = vand.u32 %v495, 2147483648
      %v509 = vsel %vm507, %v508, %v506
      %v510 = vmul.f32 %v488, %v502
      %v511 = vmul.f32 %v489, %v509
      %v512 = vmul.f32 %v478, -2.0
      %v513 = vmul.f32 %v485, -2.0
      %v514 = vmul.f32 %v512, 1.442695
      %v515 = vpow.pop %v514
      %v516 = vmul.f32 %v513, 1.442695
      %v517 = vpow.pop %v516
      %v518 = vmul.f32 %v510, 2.0
      %v519 = vmul.f32 %v511, 2.0
      %v520 = vmul.f32 %v515, %v515
      %v521 = vmul.f32 %v517, %v517
      %v522 = vadd.f32 %v520, 1.0
      %v523 = vadd.f32 %v521, 1.0
      %v524 = vmul.f32 %v515, 2.0
      %v525 = vmul.f32 %v517, 2.0
      %v526 = vand.u32 2147483647, %v518
      %vm527 = vcmp.le.f32.partialorder %v526, 0.7853982
      %vm528 = vcmp.lt.s32.totalorder %v518, 0
      %v529 = vand.u32 %v518, 2139095040
      %v530 = vshrl.u32 %v529, 23
      %v531 = vsub.s32 %v530, 127
      %v532 = vand.u32 2147483647, %v518
      %v533 = vand.u32 %v532, 8388607
      %v534 = vor.u32 %v533, 8388608
      %v535 = vsub.s32 0, %v534
      %v536 = vadd.s32 %v531, 1
      %vm537 = vcmp.gt.s32.totalorder %v536, 0
      %v538 = vsel %vm537, %v536, 0
      %v539 = vshrl.u32 %v538, 5
      %v540 = vand.u32 %v538, 31
      %v541 = vsub.s32 32, %v540
      %v542 = vshrl.u32 683565275, %v541
      %v543 = vshll.u32 683565275, %v540
      %v544 = vshrl.u32 2475754826, %v541
      %v545 = vor.u32 %v543, %v544
      %v546 = vshll.u32 2475754826, %v540
      %v547 = vshrl.u32 2131351028, %v541
      %v548 = vor.u32 %v546, %v547
      %v549 = vshll.u32 2131351028, %v540
      %v550 = vshrl.u32 2102212464, %v541
      %v551 = vor.u32 %v549, %v550
      %v552 = vshll.u32 2102212464, %v540
      %v553 = vshrl.u32 920167782, %v541
      %v554 = vor.u32 %v552, %v553
      %v555 = vshll.u32 920167782, %v540
      %v556 = vshrl.u32 1326507024, %v541
      %v557 = vor.u32 %v555, %v556
      %vm558 = vcmp.lt.s32.totalorder %v539, 1
      %vm559 = vcmp.lt.s32.totalorder %v539, 2
      %vm560 = vcmp.lt.s32.totalorder %v539, 3
      %vm561 = vcmp.lt.s32.totalorder %v539, 4
      %v562 = vsel %vm558, %v542, %v545
      %v563 = vsel %vm561, %v551, 2102212464
      %v564 = vsel %vm560, %v548, %v563
      %v565 = vsel %vm559, %v562, %v564
      %v566 = vsel %vm558, %v545, %v548
      %v567 = vsel %vm561, %v554, 920167782
      %v568 = vsel %vm560, %v551, %v567
      %v569 = vsel %vm559, %v566, %v568
      %v570 = vsel %vm558, %v548, %v551
      %v571 = vsel %vm561, %v557, 1326507024
      %v572 = vsel %vm560, %v554, %v571
      %v573 = vsel %vm559, %v570, %v572
      %v574 = vshll.u32 %v534, 8
      %v575 = vmul.u32.u64.compose %v574, %v573
      %v576 = vextract.low.u32 %v575
      %v577 = vextract.high.u32 %v575
      %v578 = vmul.u32.u64.compose %v574, %v569
      %v579 = vextract.low.u32 %v578
      %v580 = vextract.high.u32 %v578
      %v581 = vmul.u32 %v574, %v565
      %v582 = vadd.s32 %v577, %v579
      %vm583 = vc.u32 %v577, %v579
      %v584 = vadd.s32 %v580, 1
      %v585 = vsel %vm583, %v584, %v580
      %v586 = vadd.s32 %v581, %v585
      %v587 = vadd.s32 %v586, 536870912
      %v588 = vshrl.u32 %v587, 30
      %v589 = vshll.u32 %v588, 30
      %v590 = vsub.s32 %v586, %v589
      %vm591 = vcmp.lt.s32.totalorder %v590, 0
      %v592 = vsub.s32 0, %v590
      %v593 = vsel %vm591, %v592, %v590
      %v594 = vclz %v593
      %v595 = vsub.s32 %v594, 2
      %vm596 = vcmp.gt.s32.totalorder 0, %v595
      %v597 = vsel %vm596, 0, %v595
      %v598 = vsub.s32 32, %v597
      %v599 = vshll.u32 %v590, %v597
      %v600 = vshrl.u32 %v582, %v598
      %v601 = vor.u32 %v599, %v600
      %v602 = vsub.s32 4294967266, %v597
      %v603 = vadd.s32 %v602, 127
      %v604 = vshll.u32 %v603, 23
      %v605 = vor.u32 4788187, %v604
      %v606 = vand.u32 2147483647, %v605
      %v608 = vcvt.s32.f32 %v601
      %v609 = vmul.f32 %v608, %v606
      %v610 = vxor.u32 %v609, 2147483648
      %v611 = vsel %vm528, %v610, %v609
      %v612 = vsub.s32 4, %v588
      %v613 = vsel %vm528, %v612, %v588
      %v614 = vsel %vm527, %v518, %v611
      %v615 = vsel %vm527, 0, %v613
      %v616 = vcosq.f32.pop %v614
      %v617 = vsinq.f32.pop %v614
      %vm618 = vweird.f32 %v518
      %v619 = vand.u32 %v615, 3
      %vm620 = vcmp.lt.s32.totalorder %v619, 2
      %vm621 = vcmp.eq.s32.totalorder %v619, 0
      %v622 = vxor.u32 %v617, 2147483648
      %v623 = vsel %vm621, %v616, %v622
      %vm624 = vcmp.eq.s32.totalorder %v619, 2
      %v625 = vxor.u32 %v616, 2147483648
      %v626 = vsel %vm624, %v625, %v617
      %v627 = vsel %vm620, %v623, %v626
      %v628 = vsel %vm618, nan, %v627
      %v629 = vand.u32 2147483647, %v519
      %vm630 = vcmp.le.f32.partialorder %v629, 0.7853982
      %vm631 = vcmp.lt.s32.totalorder %v519, 0
      %v632 = vand.u32 %v519, 2139095040
      %v633 = vshrl.u32 %v632, 23
      %v634 = vsub.s32 %v633, 127
      %v635 = vand.u32 2147483647, %v519
      %v636 = vand.u32 %v635, 8388607
      %v637 = vor.u32 %v636, 8388608
      %v638 = vsub.s32 0, %v637
      %v639 = vadd.s32 %v634, 1
      %vm640 = vcmp.gt.s32.totalorder %v639, 0
      %v641 = vsel %vm640, %v639, 0
      %v642 = vshrl.u32 %v641, 5
      %v643 = vand.u32 %v641, 31
      %v644 = vsub.s32 32, %v643
      %v645 = vshrl.u32 683565275, %v644
      %v646 = vshll.u32 683565275, %v643
      %v647 = vshrl.u32 2475754826, %v644
      %v648 = vor.u32 %v646, %v647
      %v649 = vshll.u32 2475754826, %v643
      %v650 = vshrl.u32 2131351028, %v644
      %v651 = vor.u32 %v649, %v650
      %v652 = vshll.u32 2131351028, %v643
      %v653 = vshrl.u32 2102212464, %v644
      %v654 = vor.u32 %v652, %v653
      %v655 = vshll.u32 2102212464, %v643
      %v656 = vshrl.u32 920167782, %v644
      %v657 = vor.u32 %v655, %v656
      %v658 = vshll.u32 920167782, %v643
      %v659 = vshrl.u32 1326507024, %v644
      %v660 = vor.u32 %v658, %v659
      %vm661 = vcmp.lt.s32.totalorder %v642, 1
      %vm662 = vcmp.lt.s32.totalorder %v642, 2
      %vm663 = vcmp.lt.s32.totalorder %v642, 3
      %vm664 = vcmp.lt.s32.totalorder %v642, 4
      %v665 = vsel %vm661, %v645, %v648
      %v666 = vsel %vm664, %v654, 2102212464
      %v667 = vsel %vm663, %v651, %v666
      %v668 = vsel %vm662, %v665, %v667
      %v669 = vsel %vm661, %v648, %v651
      %v670 = vsel %vm664, %v657, 920167782
      %v671 = vsel %vm663, %v654, %v670
      %v672 = vsel %vm662, %v669, %v671
      %v673 = vsel %vm661, %v651, %v654
      %v674 = vsel %vm664, %v660, 1326507024
      %v675 = vsel %vm663, %v657, %v674
      %v676 = vsel %vm662, %v673, %v675
      %v677 = vshll.u32 %v637, 8
      %v678 = vmul.u32.u64.compose %v677, %v676
      %v679 = vextract.low.u32 %v678
      %v680 = vextract.high.u32 %v678
      %v681 = vmul.u32.u64.compose %v677, %v672
      %v682 = vextract.low.u32 %v681
      %v683 = vextract.high.u32 %v681
      %v684 = vmul.u32 %v677, %v668
      %v685 = vadd.s32 %v680, %v682
      %vm686 = vc.u32 %v680, %v682
      %v687 = vadd.s32 %v683, 1
      %v688 = vsel %vm686, %v687, %v683
      %v689 = vadd.s32 %v684, %v688
      %v690 = vadd.s32 %v689, 536870912
      %v691 = vshrl.u32 %v690, 30
      %v692 = vshll.u32 %v691, 30
      %v693 = vsub.s32 %v689, %v692
      %vm694 = vcmp.lt.s32.totalorder %v693, 0
      %v695 = vsub.s32 0, %v693
      %v696 = vsel %vm694, %v695, %v693
      %v697 = vclz %v696
      %v698 = vsub.s32 %v697, 2
      %vm699 = vcmp.gt.s32.totalorder 0, %v698
      %v700 = vsel %vm699, 0, %v698
      %v701 = vsub.s32 32, %v700
      %v702 = vshll.u32 %v693, %v700
      %v703 = vshrl.u32 %v685, %v701
      %v704 = vor.u32 %v702, %v703
      %v705 = vsub.s32 4294967266, %v700
      %v706 = vadd.s32 %v705, 127
      %v707 = vshll.u32 %v706, 23
      %v708 = vor.u32 4788187, %v707
      %v709 = vand.u32 2147483647, %v708
      %v711 = vcvt.s32.f32 %v704
      %v712 = vmul.f32 %v711, %v709
      %v713 = vxor.u32 %v712, 2147483648
      %v714 = vsel %vm631, %v713, %v712
      %v715 = vsub.s32 4, %v691
      %v716 = vsel %vm631, %v715, %v691
      %v717 = vsel %vm630, %v519, %v714
      %v718 = vsel %vm630, 0, %v716
      %v719 = vcosq.f32.pop %v717
      %v720 = vsinq.f32.pop %v717
      %vm721 = vweird.f32 %v519
      %v722 = vand.u32 %v718, 3
      %vm723 = vcmp.lt.s32.totalorder %v722, 2
      %vm724 = vcmp.eq.s32.totalorder %v722, 0
      %v725 = vxor.u32 %v720, 2147483648
      %v726 = vsel %vm724, %v719, %v725
      %vm727 = vcmp.eq.s32.totalorder %v722, 2
      %v728 = vxor.u32 %v719, 2147483648
      %v729 = vsel %vm727, %v728, %v720
      %v730 = vsel %vm723, %v726, %v729
      %v731 = vsel %vm721, nan, %v730
      %v732 = vmul.f32 %v524, %v628
      %v733 = vmul.f32 %v525, %v731
      %v734 = vadd.f32 %v522, %v732
      %v735 = vadd.f32 %v523, %v733
      %v736 = vsub.f32 1.0, %v520
      %v737 = vsub.f32 1.0, %v521
      %v738 = vrcp.pop %v734
      %v739 = vmul.f32 %v736, %v738
      %v740 = vrcp.pop %v735
      %v741 = vmul.f32 %v737, %v740
      %v742 = vand.u32 2147483647, %v518
      %vm743 = vcmp.le.f32.partialorder %v742, 0.7853982
      %vm744 = vcmp.lt.s32.totalorder %v518, 0
      %v745 = vand.u32 %v518, 2139095040
      %v746 = vshrl.u32 %v745, 23
      %v747 = vsub.s32 %v746, 127
      %v748 = vand.u32 2147483647, %v518
      %v749 = vand.u32 %v748, 8388607
      %v750 = vor.u32 %v749, 8388608
      %v751 = vsub.s32 0, %v750
      %v752 = vadd.s32 %v747, 1
      %vm753 = vcmp.gt.s32.totalorder %v752, 0
      %v754 = vsel %vm753, %v752, 0
      %v755 = vshrl.u32 %v754, 5
      %v756 = vand.u32 %v754, 31
      %v757 = vsub.s32 32, %v756
      %v758 = vshrl.u32 683565275, %v757
      %v759 = vshll.u32 683565275, %v756
      %v760 = vshrl.u32 2475754826, %v757
      %v761 = vor.u32 %v759, %v760
      %v762 = vshll.u32 2475754826, %v756
      %v763 = vshrl.u32 2131351028, %v757
      %v764 = vor.u32 %v762, %v763
      %v765 = vshll.u32 2131351028, %v756
      %v766 = vshrl.u32 2102212464, %v757
      %v767 = vor.u32 %v765, %v766
      %v768 = vshll.u32 2102212464, %v756
      %v769 = vshrl.u32 920167782, %v757
      %v770 = vor.u32 %v768, %v769
      %v771 = vshll.u32 920167782, %v756
      %v772 = vshrl.u32 1326507024, %v757
      %v773 = vor.u32 %v771, %v772
      %vm774 = vcmp.lt.s32.totalorder %v755, 1
      %vm775 = vcmp.lt.s32.totalorder %v755, 2
      %vm776 = vcmp.lt.s32.totalorder %v755, 3
      %vm777 = vcmp.lt.s32.totalorder %v755, 4
      %v778 = vsel %vm774, %v758, %v761
      %v779 = vsel %vm777, %v767, 2102212464
      %v780 = vsel %vm776, %v764, %v779
      %v781 = vsel %vm775, %v778, %v780
      %v782 = vsel %vm774, %v761, %v764
      %v783 = vsel %vm777, %v770, 920167782
      %v784 = vsel %vm776, %v767, %v783
      %v785 = vsel %vm775, %v782, %v784
      %v786 = vsel %vm774, %v764, %v767
      %v787 = vsel %vm777, %v773, 1326507024
      %v788 = vsel %vm776, %v770, %v787
      %v789 = vsel %vm775, %v786, %v788
      %v790 = vshll.u32 %v750, 8
      %v791 = vmul.u32.u64.compose %v790, %v789
      %v792 = vextract.low.u32 %v791
      %v793 = vextract.high.u32 %v791
      %v794 = vmul.u32.u64.compose %v790, %v785
      %v795 = vextract.low.u32 %v794
      %v796 = vextract.high.u32 %v794
      %v797 = vmul.u32 %v790, %v781
      %v798 = vadd.s32 %v793, %v795
      %vm799 = vc.u32 %v793, %v795
      %v800 = vadd.s32 %v796, 1
      %v801 = vsel %vm799, %v800, %v796
      %v802 = vadd.s32 %v797, %v801
      %v803 = vadd.s32 %v802, 536870912
      %v804 = vshrl.u32 %v803, 30
      %v805 = vshll.u32 %v804, 30
      %v806 = vsub.s32 %v802, %v805
      %vm807 = vcmp.lt.s32.totalorder %v806, 0
      %v808 = vsub.s32 0, %v806
      %v809 = vsel %vm807, %v808, %v806
      %v810 = vclz %v809
      %v811 = vsub.s32 %v810, 2
      %vm812 = vcmp.gt.s32.totalorder 0, %v811
      %v813 = vsel %vm812, 0, %v811
      %v814 = vsub.s32 32, %v813
      %v815 = vshll.u32 %v806, %v813
      %v816 = vshrl.u32 %v798, %v814
      %v817 = vor.u32 %v815, %v816
      %v818 = vsub.s32 4294967266, %v813
      %v819 = vadd.s32 %v818, 127
      %v820 = vshll.u32 %v819, 23
      %v821 = vor.u32 4788187, %v820
      %v822 = vand.u32 2147483647, %v821
      %v824 = vcvt.s32.f32 %v817
      %v825 = vmul.f32 %v824, %v822
      %v826 = vxor.u32 %v825, 2147483648
      %v827 = vsel %vm744, %v826, %v825
      %v828 = vsub.s32 4, %v804
      %v829 = vsel %vm744, %v828, %v804
      %v830 = vsel %vm743, %v518, %v827
      %v831 = vsel %vm743, 0, %v829
      %v832 = vcosq.f32.pop %v830
      %v833 = vsinq.f32.pop %v830
      %vm834 = vweird.f32 %v518
      %v835 = vadd.s32 %v831, 3
      %v836 = vand.u32 %v835, 3
      %vm837 = vcmp.lt.s32.totalorder %v836, 2
      %vm838 = vcmp.eq.s32.totalorder %v836, 0
      %v839 = vxor.u32 %v833, 2147483648
      %v840 = vsel %vm838, %v832, %v839
      %vm841 = vcmp.eq.s32.totalorder %v836, 2
      %v842 = vxor.u32 %v832, 2147483648
      %v843 = vsel %vm841, %v842, %v833
      %v844 = vsel %vm837, %v840, %v843
      %v845 = vsel %vm834, nan, %v844
      %v846 = vand.u32 2147483647, %v519
      %vm847 = vcmp.le.f32.partialorder %v846, 0.7853982
      %vm848 = vcmp.lt.s32.totalorder %v519, 0
      %v849 = vand.u32 %v519, 2139095040
      %v850 = vshrl.u32 %v849, 23
      %v851 = vsub.s32 %v850, 127
      %v852 = vand.u32 2147483647, %v519
      %v853 = vand.u32 %v852, 8388607
      %v854 = vor.u32 %v853, 8388608
      %v855 = vsub.s32 0, %v854
      %v856 = vadd.s32 %v851, 1
      %vm857 = vcmp.gt.s32.totalorder %v856, 0
      %v858 = vsel %vm857, %v856, 0
      %v859 = vshrl.u32 %v858, 5
      %v860 = vand.u32 %v858, 31
      %v861 = vsub.s32 32, %v860
      %v862 = vshrl.u32 683565275, %v861
      %v863 = vshll.u32 683565275, %v860
      %v864 = vshrl.u32 2475754826, %v861
      %v865 = vor.u32 %v863, %v864
      %v866 = vshll.u32 2475754826, %v860
      %v867 = vshrl.u32 2131351028, %v861
      %v868 = vor.u32 %v866, %v867
      %v869 = vshll.u32 2131351028, %v860
      %v870 = vshrl.u32 2102212464, %v861
      %v871 = vor.u32 %v869, %v870
      %v872 = vshll.u32 2102212464, %v860
      %v873 = vshrl.u32 920167782, %v861
      %v874 = vor.u32 %v872, %v873
      %v875 = vshll.u32 920167782, %v860
      %v876 = vshrl.u32 1326507024, %v861
      %v877 = vor.u32 %v875, %v876
      %vm878 = vcmp.lt.s32.totalorder %v859, 1
      %vm879 = vcmp.lt.s32.totalorder %v859, 2
      %vm880 = vcmp.lt.s32.totalorder %v859, 3
      %vm881 = vcmp.lt.s32.totalorder %v859, 4
      %v882 = vsel %vm878, %v862, %v865
      %v883 = vsel %vm881, %v871, 2102212464
      %v884 = vsel %vm880, %v868, %v883
      %v885 = vsel %vm879, %v882, %v884
      %v886 = vsel %vm878, %v865, %v868
      %v887 = vsel %vm881, %v874, 920167782
      %v888 = vsel %vm880, %v871, %v887
      %v889 = vsel %vm879, %v886, %v888
      %v890 = vsel %vm878, %v868, %v871
      %v891 = vsel %vm881, %v877, 1326507024
      %v892 = vsel %vm880, %v874, %v891
      %v893 = vsel %vm879, %v890, %v892
      %v894 = vshll.u32 %v854, 8
      %v895 = vmul.u32.u64.compose %v894, %v893
      %v896 = vextract.low.u32 %v895
      %v897 = vextract.high.u32 %v895
      %v898 = vmul.u32.u64.compose %v894, %v889
      %v899 = vextract.low.u32 %v898
      %v900 = vextract.high.u32 %v898
      %v901 = vmul.u32 %v894, %v885
      %v902 = vadd.s32 %v897, %v899
      %vm903 = vc.u32 %v897, %v899
      %v904 = vadd.s32 %v900, 1
      %v905 = vsel %vm903, %v904, %v900
      %v906 = vadd.s32 %v901, %v905
      %v907 = vadd.s32 %v906, 536870912
      %v908 = vshrl.u32 %v907, 30
      %v909 = vshll.u32 %v908, 30
      %v910 = vsub.s32 %v906, %v909
      %vm911 = vcmp.lt.s32.totalorder %v910, 0
      %v912 = vsub.s32 0, %v910
      %v913 = vsel %vm911, %v912, %v910
      %v914 = vclz %v913
      %v915 = vsub.s32 %v914, 2
      %vm916 = vcmp.gt.s32.totalorder 0, %v915
      %v917 = vsel %vm916, 0, %v915
      %v918 = vsub.s32 32, %v917
      %v919 = vshll.u32 %v910, %v917
      %v920 = vshrl.u32 %v902, %v918
      %v921 = vor.u32 %v919, %v920
      %v922 = vsub.s32 4294967266, %v917
      %v923 = vadd.s32 %v922, 127
      %v924 = vshll.u32 %v923, 23
      %v925 = vor.u32 4788187, %v924
      %v926 = vand.u32 2147483647, %v925
      %v928 = vcvt.s32.f32 %v921
      %v929 = vmul.f32 %v928, %v926
      %v930 = vxor.u32 %v929, 2147483648
      %v931 = vsel %vm848, %v930, %v929
      %v932 = vsub.s32 4, %v908
      %v933 = vsel %vm848, %v932, %v908
      %v934 = vsel %vm847, %v519, %v931
      %v935 = vsel %vm847, 0, %v933
      %v936 = vcosq.f32.pop %v934
      %v937 = vsinq.f32.pop %v934
      %vm938 = vweird.f32 %v519
      %v939 = vadd.s32 %v935, 3
      %v940 = vand.u32 %v939, 3
      %vm941 = vcmp.lt.s32.totalorder %v940, 2
      %vm942 = vcmp.eq.s32.totalorder %v940, 0
      %v943 = vxor.u32 %v937, 2147483648
      %v944 = vsel %vm942, %v936, %v943
      %vm945 = vcmp.eq.s32.totalorder %v940, 2
      %v946 = vxor.u32 %v936, 2147483648
      %v947 = vsel %vm945, %v946, %v937
      %v948 = vsel %vm941, %v944, %v947
      %v949 = vsel %vm938, nan, %v948
      %v950 = vmul.f32 %v524, %v845
      %v951 = vmul.f32 %v525, %v949
      %v952 = vmul.f32 %v950, %v738
      %v953 = vmul.f32 %v951, %v740
      %v954 = vadd.f32 %v478, 1e-08
      %v955 = vadd.f32 %v485, 1e-08
      %v956 = vmul.f32 %v954, %v954
      %v957 = vmul.f32 %v955, %v955
      %v958 = vmul.f32 %v510, %v510
      %v959 = vmul.f32 %v511, %v511
      %v960 = vadd.f32 %v956, %v958
      %v961 = vadd.f32 %v957, %v959
      %v962 = vrcp.pop %v960
      %v963 = vrcp.pop %v961
      %v964 = vmul.f32 %v739, %v954
      %v965 = vmul.f32 %v741, %v955
      %v966 = vmul.f32 %v952, %v510
      %v967 = vmul.f32 %v953, %v511
      %v968 = vadd.f32 %v964, %v966
      %v969 = vadd.f32 %v965, %v967
      %v970 = vmul.f32 %v968, %v962
      %v971 = vmul.f32 %v969, %v963
      %v972 = vmul.f32 %v952, %v954
      %v973 = vmul.f32 %v953, %v955
      %v974 = vmul.f32 %v739, %v510
      %v975 = vmul.f32 %v741, %v511
      %v976 = vsub.f32 %v972, %v974
      %v977 = vsub.f32 %v973, %v975
      %v978 = vmul.f32 %v976, %v962
      %v979 = vmul.f32 %v977, %v963
      %vm980 = vcmask 130048
      %v982 = vsel %vm980, %v970, 0
      %v985 = vsel %vm980, %v971, 0
      %987 = vmatprep.subr.mxu0 0.0
      %988 = vmatpush1.msra.mxu0 %v284
      %989 = vmatprep.subr.mxu0 0.0
      %990 = vmatpush1.msra.mxu0 %v285
      %991 = vmatprep.subr.mxu0 0.0
      %992 = vmatpush1.msra.mxu0 0.0
      %993 = vmatprep.subr.mxu0 0.0
      %994 = vmatpush1.msra.mxu0 0.0
      %995 = vmatprep.subr.mxu0 0.0
      %996 = vmatpush1.msra.mxu0 0.0
      %997 = vmatprep.subr.mxu0 0.0
      %998 = vmatpush1.msra.mxu0 0.0
      %999 = vmatprep.subr.mxu0 0.0
      %1000 = vmatpush1.msra.mxu0 0.0
      %1001 = vmatprep.subr.mxu0 0.0
      %1002 = vmatpush1.msra.mxu0 0.0
      %1003 = vmatprep.subr.mxu0 0.0
      %1004 = vmatpush1.msra.mxu0 0.0
      %1005 = vmatprep.subr.mxu0 0.0
      %1006 = vmatpush1.msra.mxu0 0.0
      %1007 = vmatprep.subr.mxu0 0.0
      %1008 = vmatpush1.msra.mxu0 0.0
      %1009 = vmatprep.subr.mxu0 0.0
      %1010 = vmatpush1.msra.mxu0 0.0
      %1011 = vmatprep.subr.mxu0 0.0
      %1012 = vmatpush1.msra.mxu0 0.0
      %1013 = vmatprep.subr.mxu0 0.0
      %1014 = vmatpush1.msra.mxu0 0.0
      %1015 = vmatprep.subr.mxu0 0.0
      %1016 = vmatpush1.msra.mxu0 0.0
      %1017 = vmatprep.subr.mxu0 0.0
      %1018 = vmatpush1.msra.mxu0 0.0
      %1019 = vmatprep.subr.mxu0 0.0
      %1020 = vmatpush1.msra.mxu0 0.0
      %1021 = vmatprep.subr.mxu0 0.0
      %1022 = vmatpush1.msra.mxu0 0.0
      %1023 = vmatprep.subr.mxu0 0.0
      %1024 = vmatpush1.msra.mxu0 0.0
      %1025 = vmatprep.subr.mxu0 0.0
      %1026 = vmatpush1.msra.mxu0 0.0
      %1027 = vmatprep.subr.mxu0 0.0
      %1028 = vmatpush1.msra.mxu0 0.0
      %1029 = vmatprep.subr.mxu0 0.0
      %1030 = vmatpush1.msra.mxu0 0.0
      %1031 = vmatprep.subr.mxu0 0.0
      %1032 = vmatpush1.msra.mxu0 0.0
      %1033 = vmatprep.subr.mxu0 0.0
      %1034 = vmatpush1.msra.mxu0 0.0
      %1035 = vmatprep.subr.mxu0 0.0
      %1036 = vmatpush1.msra.mxu0 0.0
      %1037 = vmatprep.subr.mxu0 0.0
      %1038 = vmatpush1.msra.mxu0 0.0
      %1039 = vmatprep.subr.mxu0 0.0
      %1040 = vmatpush1.msra.mxu0 0.0
      %1041 = vmatprep.subr.mxu0 0.0
      %1042 = vmatpush1.msra.mxu0 0.0
      %1043 = vmatprep.subr.mxu0 0.0
      %1044 = vmatpush1.msra.mxu0 0.0
      %1045 = vmatprep.subr.mxu0 0.0
      %1046 = vmatpush1.msra.mxu0 0.0
      %1047 = vmatprep.subr.mxu0 0.0
      %1048 = vmatpush1.msra.mxu0 0.0
      %1049 = vmatprep.subr.mxu0 0.0
      %1050 = vmatpush1.msra.mxu0 0.0
      %1051 = vmatprep.mubr.f32.mxu0 0.0
      %1052 = vmatmul.mubr.f32.gmra.mrb[0].mxu0 %v982
      %v1053 = vpop.f32.mrb[0].mxu0
      %v1054 = vadd.f32 0.0, %v1053
      %v1055 = vpop.f32.mrb[0].mxu0
      %1056 = vmatprep.mubr.f32.mxu0 0.0
      %1057 = vmatmul.mubr.f32.gmra.mrb[0].mxu0 %v985
      %v1058 = vpop.f32.mrb[0].mxu0
      %v1059 = vadd.f32 0.0, %v1058
      %v1060 = vpop.f32.mrb[0].mxu0
      %1061 = vdwg.mxu0
      %v1063 = vsel %vm980, %v978, 0
      %v1066 = vsel %vm980, %v979, 0
      %1068 = vmatprep.subr.mxu0 0.0
      %1069 = vmatpush1.msra.mxu0 %v284
      %1070 = vmatprep.subr.mxu0 0.0
      %1071 = vmatpush1.msra.mxu0 %v285
      %1072 = vmatprep.subr.mxu0 0.0
      %1073 = vmatpush1.msra.mxu0 0.0
      %1074 = vmatprep.subr.mxu0 0.0
      %1075 = vmatpush1.msra.mxu0 0.0
      %1076 = vmatprep.subr.mxu0 0.0
      %1077 = vmatpush1.msra.mxu0 0.0
      %1078 = vmatprep.subr.mxu0 0.0
      %1079 = vmatpush1.msra.mxu0 0.0
      %1080 = vmatprep.subr.mxu0 0.0
      %1081 = vmatpush1.msra.mxu0 0.0
      %1082 = vmatprep.subr.mxu0 0.0
      %1083 = vmatpush1.msra.mxu0 0.0
      %1084 = vmatprep.subr.mxu0 0.0
      %1085 = vmatpush1.msra.mxu0 0.0
      %1086 = vmatprep.subr.mxu0 0.0
      %1087 = vmatpush1.msra.mxu0 0.0
      %1088 = vmatprep.subr.mxu0 0.0
      %1089 = vmatpush1.msra.mxu0 0.0
      %1090 = vmatprep.subr.mxu0 0.0
      %1091 = vmatpush1.msra.mxu0 0.0
      %1092 = vmatprep.subr.mxu0 0.0
      %1093 = vmatpush1.msra.mxu0 0.0
      %1094 = vmatprep.subr.mxu0 0.0
      %1095 = vmatpush1.msra.mxu0 0.0
      %1096 = vmatprep.subr.mxu0 0.0
      %1097 = vmatpush1.msra.mxu0 0.0
      %1098 = vmatprep.subr.mxu0 0.0
      %1099 = vmatpush1.msra.mxu0 0.0
      %1100 = vmatprep.subr.mxu0 0.0
      %1101 = vmatpush1.msra.mxu0 0.0
      %1102 = vmatprep.subr.mxu0 0.0
      %1103 = vmatpush1.msra.mxu0 0.0
      %1104 = vmatprep.subr.mxu0 0.0
      %1105 = vmatpush1.msra.mxu0 0.0
      %1106 = vmatprep.subr.mxu0 0.0
      %1107 = vmatpush1.msra.mxu0 0.0
      %1108 = vmatprep.subr.mxu0 0.0
      %1109 = vmatpush1.msra.mxu0 0.0
      %1110 = vmatprep.subr.mxu0 0.0
      %1111 = vmatpush1.msra.mxu0 0.0
      %1112 = vmatprep.subr.mxu0 0.0
      %1113 = vmatpush1.msra.mxu0 0.0
      %1114 = vmatprep.subr.mxu0 0.0
      %1115 = vmatpush1.msra.mxu0 0.0
      %1116 = vmatprep.subr.mxu0 0.0
      %1117 = vmatpush1.msra.mxu0 0.0
      %1118 = vmatprep.subr.mxu0 0.0
      %1119 = vmatpush1.msra.mxu0 0.0
      %1120 = vmatprep.subr.mxu0 0.0
      %1121 = vmatpush1.msra.mxu0 0.0
      %1122 = vmatprep.subr.mxu0 0.0
      %1123 = vmatpush1.msra.mxu0 0.0
      %1124 = vmatprep.subr.mxu0 0.0
      %1125 = vmatpush1.msra.mxu0 0.0
      %1126 = vmatprep.subr.mxu0 0.0
      %1127 = vmatpush1.msra.mxu0 0.0
      %1128 = vmatprep.subr.mxu0 0.0
      %1129 = vmatpush1.msra.mxu0 0.0
      %1130 = vmatprep.subr.mxu0 0.0
      %1131 = vmatpush1.msra.mxu0 0.0
      %1132 = vmatprep.mubr.f32.mxu0 0.0
      %1133 = vmatmul.mubr.f32.gmra.mrb[0].mxu0 %v1063
      %v1134 = vpop.f32.mrb[0].mxu0
      %v1135 = vadd.f32 0.0, %v1134
      %v1136 = vpop.f32.mrb[0].mxu0
      %1137 = vmatprep.mubr.f32.mxu0 0.0
      %1138 = vmatmul.mubr.f32.gmra.mrb[0].mxu0 %v1066
      %v1139 = vpop.f32.mrb[0].mxu0
      %v1140 = vadd.f32 0.0, %v1139
      %v1141 = vpop.f32.mrb[0].mxu0
      %1142 = vdwg.mxu0
      %v1143 = vmul.f32 %v1054, %v264
      %v1144 = vmul.f32 %v1059, %v265
      %v1145 = vmul.f32 %v1135, %v266
      %v1146 = vmul.f32 %v1140, %v267
      %v1147 = vsub.f32 %v1143, %v1145
      %v1148 = vsub.f32 %v1144, %v1146
      %1149 = vst [vmem:[%s256] sm:$0xff] %v1147
      %1150 = vst [vmem:[%s256 + $0x8] sm:$0xff] %v1148
      %v1151 = vmul.f32 %v1054, %v266
      %v1152 = vmul.f32 %v1059, %v267
      %v1153 = vmul.f32 %v1135, %v264
      %v1154 = vmul.f32 %v1140, %v265
      %v1155 = vadd.f32 %v1151, %v1153
      %v1156 = vadd.f32 %v1152, %v1154
      %1157 = vst [vmem:[%s262] sm:$0xff] %v1155
      %1158 = vst [vmem:[%s262 + $0x8] sm:$0xff] %v1156
      %s1159 = smul.u32 2, %s17
      %p1160 = scmp.lt.s32.totalorder %s1159, 3
      %s1161 = scalar_select %p1160, %s1159, 3
      %s1162 = smul.addr %s1161, 8
      %s1163 = scalar_lea.vmem %s4, %s1162
      %s1164 = smul.u32 2, %s17
      %p1165 = scmp.lt.s32.totalorder %s1164, 3
      %s1166 = scalar_select %p1165, %s1164, 3
      %s1167 = smul.addr %s1166, 8
      %s1168 = scalar_lea.vmem %s5, %s1167
      // Predicated region
      $region37: #{_lambda_.3} parent=35 // pred_check
        %p1169 = pneg %p129
      $region38: #{_lambda_.3} parent=35 // pred_check_branch
        %1171 = sbr.rel (%p1169) target = $region40
      $region39: #{_lambda_.3} parent=35 // pred_region
        %s1172 = smul.u32 2, %s17
      $region40: #{_lambda_.3} parent=35 // pred_fallthru
        _
      // Predicated region
      $region41: #{_lambda_.3} parent=35 // pred_check
        %p1173 = pneg %p155
      $region42: #{_lambda_.3} parent=35 // pred_check_branch
        %1175 = sbr.rel (%p1173) target = $region44
      $region43: #{_lambda_.3} parent=35 // pred_region
        %s1176 = smul.u32 2, %s17
      $region44: #{_lambda_.3} parent=35 // pred_fallthru
        _
    $region36: #{_lambda_.3} parent=5 // pred_fallthru
      _
    %p1177 = scmp.le.s32.totalorder 2, %s12
    // Predicated region
    $region45: #{_lambda_.3} parent=5 // pred_check
      %p1178 = pneg %p1177
    $region46: #{_lambda_.3} parent=5 // pred_check_branch
      %1180 = sbr.rel (%p1178) target = $region48
    $region47: #{_lambda_.3} parent=5 // pred_region
      %s1181 = ssub.s32 %s12, 2
      // Predicated region
      $region49: #{_lambda_.3} parent=47 // pred_check
        %p1182 = pneg %p135
      $region50: #{_lambda_.3} parent=47 // pred_check_branch
        %1184 = sbr.rel (%p1182) target = $region52
      $region51: #{_lambda_.3} parent=47 // pred_region
        %s1185 = smul.u32 2, %s18
        %p1186 = scmp.lt.s32.totalorder %s1185, 3
        %s1187 = scalar_select %p1186, %s1185, 3
        %s1188 = smul.addr %s1187, 8
        %s1189 = scalar_lea.vmem %s4, %s1188
      $region52: #{_lambda_.3} parent=47 // pred_fallthru
        _
      // Predicated region
      $region53: #{_lambda_.3} parent=47 // pred_check
        %p1190 = pneg %p161
      $region54: #{_lambda_.3} parent=47 // pred_check_branch
        %1192 = sbr.rel (%p1190) target = $region56
      $region55: #{_lambda_.3} parent=47 // pred_region
        %s1193 = smul.u32 2, %s18
        %p1194 = scmp.lt.s32.totalorder %s1193, 3
        %s1195 = scalar_select %p1194, %s1193, 3
        %s1196 = smul.addr %s1195, 8
        %s1197 = scalar_lea.vmem %s5, %s1196
      $region56: #{_lambda_.3} parent=47 // pred_fallthru
        _
    $region48: #{_lambda_.3} parent=5 // pred_fallthru
      _
  $region6: #{_lambda_.3} parent=0 // loop_footer
    %s16 = sadd.s32 1, %s12
  $region7: #{_lambda_.3} parent=0 // loop_footer_branch
    %11 = sbr.rel target = $region3
  $region8: #{_lambda_.3} parent=0 // loop_exit
    _

// kernel: _lambda_.2
$region0: #{_lambda_.2}
  #allocation0 [shape = 'u32[]', space=smem, size = 0x4, offset = 0x4, fixed_abs, tag = 'smem constant byte address 0x4 - core index']
  #allocation1 [shape = 'u32[144,128]{1,0:T(1,128)}', space=vmem, size = 0x12000, scoped, tag = 'internal scratch']
  %s0 = inlined_call_operand.vmem [shape: f32[98,128], index: 0, kind: input, shape index: {}]
  %s1 = inlined_call_operand.vmem [shape: f32[128,128], index: 1, kind: input, shape index: {}]
  %s2 = inlined_call_operand.vmem [shape: f32[1,128], index: 2, kind: input, shape index: {}]
  %s3 = inlined_call_operand.vmem [shape: f32[98,128], index: 3, kind: output, shape index: {}]
  %s4 = sld [smem:[#allocation0]]
  $region93: #{_lambda_.2} parent=0
    _
  %s6 = ssub.s32 1, %s4
  %s7 = scalar_select 0, %s6, %s4
  $region1: #{_lambda_.2} parent=0
    #allocation2 [shape = 'u8[65536]{0}', space=vmem, size = 0x10000, scoped, tag = 'output window, operand 0']
    loop: start=0, step=1, limit=4
    $region2: #{_lambda_.2} parent=1 // loop_pre_header
      _
    $region3: #{_lambda_.2} parent=1 // loop_header
      %s9 = sphi 0, %s13
      %p10 = scmp.ge.s32.totalorder %s9, 4
      %s19 = sphi 0, %s21
      %s22 = sphi 0, %s19
      %s23 = sphi 0, %s22
      %s39 = sphi 0, %s23
      %s43 = sphi 0, %s43
      %s45 = sphi 0, %s43
      %s46 = sphi 0, %s45
      %s60 = sphi 0, %s46
      %s64 = sphi 0, %s64
      %s66 = sphi 0, %s64
      %s67 = sphi 0, %s66
      %s81 = sphi 0, %s67
      %s87 = sphi 0, %s89
      %s90 = sphi 0, %s87
      %s91 = sphi 0, %s90
      %s107 = sphi 0, %s91
    $region4: #{_lambda_.2} parent=1 // loop_header_branch
      %12 = sbr.rel (%p10) target = $region8
    $region5: #{_lambda_.2} parent=1 // loop_body
      %s14 = ssub.s32 %s9, 1
      %s15 = ssub.s32 %s9, 2
      %s16 = sadd.s32 %s9, 1
      %s17 = ssub.s32 %s9, %s16
      %p18 = scmp.eq.s32.totalorder %s17, 0
      %s20 = sadd.s32 %s19, 1
      %s21 = scalar_select %p18, %s19, %s20
      %p24 = pneg %p18
      %p25 = scmp.eq.s32.totalorder %s9, 1
      %p26 = por %p24, %p25
      %p27 = scmp.ne.s32.totalorder %s19, %s22
      %p28 = scmp.eq.s32.totalorder %s9, 0
      %p29 = por %p27, %p28
      %p30 = scmp.ne.s32.totalorder %s19, %s22
      %p31 = scmp.eq.s32.totalorder %s14, 1
      %p32 = por %p30, %p31
      %p33 = scmp.ne.s32.totalorder %s22, %s23
      %p34 = scmp.eq.s32.totalorder %s14, 0
      %p35 = por %p33, %p34
      %p36 = scmp.ne.s32.totalorder %s22, %s23
      %p37 = scmp.eq.s32.totalorder %s15, 1
      %p38 = por %p36, %p37
      %p40 = scmp.ne.s32.totalorder %s23, %s39
      %p41 = scmp.eq.s32.totalorder %s15, 0
      %p42 = por %p40, %p41
      %s44 = sadd.s32 %s43, 1
      %p47 = scmp.eq.s32.totalorder %s9, 1
      %p48 = scmp.ne.s32.totalorder %s43, %s45
      %p49 = scmp.eq.s32.totalorder %s9, 0
      %p50 = por %p48, %p49
      %p51 = scmp.ne.s32.totalorder %s43, %s45
      %p52 = scmp.eq.s32.totalorder %s14, 1
      %p53 = por %p51, %p52
      %p54 = scmp.ne.s32.totalorder %s45, %s46
      %p55 = scmp.eq.s32.totalorder %s14, 0
      %p56 = por %p54, %p55
      %p57 = scmp.ne.s32.totalorder %s45, %s46
      %p58 = scmp.eq.s32.totalorder %s15, 1
      %p59 = por %p57, %p58
      %p61 = scmp.ne.s32.totalorder %s46, %s60
      %p62 = scmp.eq.s32.totalorder %s15, 0
      %p63 = por %p61, %p62
      %s65 = sadd.s32 %s64, 1
      %p68 = scmp.eq.s32.totalorder %s9, 1
      %p69 = scmp.ne.s32.totalorder %s64, %s66
      %p70 = scmp.eq.s32.totalorder %s9, 0
      %p71 = por %p69, %p70
      %p72 = scmp.ne.s32.totalorder %s64, %s66
      %p73 = scmp.eq.s32.totalorder %s14, 1
      %p74 = por %p72, %p73
      %p75 = scmp.ne.s32.totalorder %s66, %s67
      %p76 = scmp.eq.s32.totalorder %s14, 0
      %p77 = por %p75, %p76
      %p78 = scmp.ne.s32.totalorder %s66, %s67
      %p79 = scmp.eq.s32.totalorder %s15, 1
      %p80 = por %p78, %p79
      %p82 = scmp.ne.s32.totalorder %s67, %s81
      %p83 = scmp.eq.s32.totalorder %s15, 0
      %p84 = por %p82, %p83
      %s85 = ssub.s32 %s9, %s16
      %p86 = scmp.eq.s32.totalorder %s85, 0
      %s88 = sadd.s32 %s87, 1
      %s89 = scalar_select %p86, %s87, %s88
      %p92 = pneg %p86
      %p93 = scmp.eq.s32.totalorder %s9, 1
      %p94 = por %p92, %p93
      %p95 = scmp.ne.s32.totalorder %s87, %s90
      %p96 = scmp.eq.s32.totalorder %s9, 0
      %p97 = por %p95, %p96
      %p98 = scmp.ne.s32.totalorder %s87, %s90
      %p99 = scmp.eq.s32.totalorder %s14, 1
      %p100 = por %p98, %p99
      %p101 = scmp.ne.s32.totalorder %s90, %s91
      %p102 = scmp.eq.s32.totalorder %s14, 0
      %p103 = por %p101, %p102
      %p104 = scmp.ne.s32.totalorder %s90, %s91
      %p105 = scmp.eq.s32.totalorder %s15, 1
      %p106 = por %p104, %p105
      %p108 = scmp.ne.s32.totalorder %s91, %s107
      %p109 = scmp.eq.s32.totalorder %s15, 0
      %p110 = por %p108, %p109
      %p111 = scmp.le.s32.totalorder 1, %s9
      %p112 = scmp.lt.s32.totalorder %s9, 3
      %p113 = pnand %p111, %p112
      %p114 = pneg %p113
      // Predicated region
      $region9: #{_lambda_.2} parent=5 // pred_check
        _
      $region10: #{_lambda_.2} parent=5 // pred_check_branch
        %116 = sbr.rel (%p113) target = $region12
      $region11: #{_lambda_.2} parent=5 // pred_region
        %s117 = ssub.s32 %s9, 1
        // Predicated region
        $region13: #{_lambda_.2} parent=11 // pred_check
          %p118 = pneg %p56
        $region14: #{_lambda_.2} parent=11 // pred_check_branch
          %120 = sbr.rel (%p118) target = $region16
        $region15: #{_lambda_.2} parent=11 // pred_region
          _
        $region16: #{_lambda_.2} parent=11 // pred_fallthru
          _
        // Predicated region
        $region17: #{_lambda_.2} parent=11 // pred_check
          %p121 = pneg %p77
        $region18: #{_lambda_.2} parent=11 // pred_check_branch
          %123 = sbr.rel (%p121) target = $region20
        $region19: #{_lambda_.2} parent=11 // pred_region
          _
        $region20: #{_lambda_.2} parent=11 // pred_fallthru
          _
      $region12: #{_lambda_.2} parent=5 // pred_fallthru
        _
      %p124 = scmp.lt.s32.totalorder %s9, 2
      // Predicated region
      $region21: #{_lambda_.2} parent=5 // pred_check
        %p125 = pneg %p124
      $region22: #{_lambda_.2} parent=5 // pred_check_branch
        %127 = sbr.rel (%p125) target = $region24
      $region23: #{_lambda_.2} parent=5 // pred_region
        // Predicated region
        $region25: #{_lambda_.2} parent=23 // pred_check
          %p128 = pneg %p29
        $region26: #{_lambda_.2} parent=23 // pred_check_branch
          %130 = sbr.rel (%p128) target = $region28
        $region27: #{_lambda_.2} parent=23 // pred_region
          %s131 = smul.u32 8, %s9
          %s132 = ssub.s32 13, %s131
          %p133 = scmp.lt.s32.totalorder %s132, 8
          %s134 = scalar_select %p133, %s132, 8
          %s135 = smul.u32 128, %s134
          %p136 = scmp.lt.s32.totalorder %s131, 12
          %s137 = scalar_select %p136, %s131, 12
          %s138 = smul.addr %s137, 8
          %s139 = scalar_lea.vmem %s0, %s138
          %s140 = smul.u32 8, %s9
          %s141 = ssub.s32 13, %s140
          %p142 = scmp.lt.s32.totalorder %s141, 8
          %s143 = scalar_select %p142, %s141, 8
          %s144 = smul.u32 128, %s143
        $region28: #{_lambda_.2} parent=23 // pred_fallthru
          _
      $region24: #{_lambda_.2} parent=5 // pred_fallthru
        _
      %p145 = scmp.le.s32.totalorder 1, %s9
      %p146 = scmp.lt.s32.totalorder %s9, 3
      %p147 = pnand %p145, %p146
      %p148 = pneg %p147
      // Predicated region
      $region29: #{_lambda_.2} parent=5 // pred_check
        _
      $region30: #{_lambda_.2} parent=5 // pred_check_branch
        %150 = sbr.rel (%p147) target = $region32
      $region31: #{_lambda_.2} parent=5 // pred_region
        %s151 = ssub.s32 %s9, 1
        %s152 = smul.u32 8, %s14
        %s153 = ssub.s32 13, %s152
        %p154 = scmp.lt.s32.totalorder %s153, 8
        %s155 = scalar_select %p154, %s153, 8
        %s156 = smul.u32 128, %s155
        %p157 = scmp.lt.s32.totalorder %s152, 12
        %s158 = scalar_select %p157, %s152, 12
        %s159 = smul.addr %s158, 8
        %s160 = scalar_lea.vmem %s0, %s159
        %p161 = pneg %p35
        %p162 = pneg %p32
        %p163 = pneg %p56
        %p164 = pneg %p53
        %p165 = pneg %p77
        %p166 = pneg %p74
        %p167 = pneg %p103
        %p168 = pneg %p100
        %s169 = sand.u32 %s90, 1
        %s170 = sand.u32 %s90, 1
        %s171 = smul.addr %s170, 64
        %s172 = scalar_lea.vmem [#allocation2], %s171
        %s173 = smul.u32 8, %s14
        %s174 = ssub.s32 13, %s173
        %p175 = scmp.lt.s32.totalorder %s174, 8
        %s176 = scalar_select %p175, %s174, 8
        %s177 = smul.u32 128, %s176
        %p178 = scmp.lt.s32.totalorder %s173, 12
        %s179 = scalar_select %p178, %s173, 12
        %s180 = smul.addr %s179, 8
        %s181 = scalar_lea.vmem %s0, %s180
        %s182 = smul.u32 8, %s14
        %s183 = ssub.s32 13, %s182
        %p184 = scmp.lt.s32.totalorder %s183, 8
        %s185 = scalar_select %p184, %s183, 8
        %s186 = smul.u32 128, %s185
        %s187 = smul.u32 8, %s14
        %s188 = ssub.s32 13, %s187
        %p189 = scmp.lt.s32.totalorder %s188, 8
        %s190 = scalar_select %p189, %s188, 8
        %s191 = smul.u32 128, %s190
        %v192 = vld [vmem:[%s181] sm:$0xff]
        %v193 = vld [vmem:[%s181 + $0x8] sm:$0xff]
        %v194 = vld [vmem:[%s181 + $0x10] sm:$0xff]
        %v195 = vld [vmem:[%s181 + $0x18] sm:$0xff]
        %v196 = vld [vmem:[%s181 + $0x20] sm:$0xff]
        %v197 = vld [vmem:[%s181 + $0x28] sm:$0xff]
        %v198 = vld [vmem:[%s181 + $0x30] sm:$0xff]
        %v199 = vld [vmem:[%s181 + $0x38] sm:$0xff]
        %v200 = vld [vmem:[%s1] sm:$0xff]
        %v201 = vld [vmem:[%s1 + $0x8] sm:$0xff]
        %v202 = vld [vmem:[%s1 + $0x10] sm:$0xff]
        %v203 = vld [vmem:[%s1 + $0x18] sm:$0xff]
        %v204 = vld [vmem:[%s1 + $0x20] sm:$0xff]
        %v205 = vld [vmem:[%s1 + $0x28] sm:$0xff]
        %v206 = vld [vmem:[%s1 + $0x30] sm:$0xff]
        %v207 = vld [vmem:[%s1 + $0x38] sm:$0xff]
        %v208 = vld [vmem:[%s1 + $0x40] sm:$0xff]
        %v209 = vld [vmem:[%s1 + $0x48] sm:$0xff]
        %v210 = vld [vmem:[%s1 + $0x50] sm:$0xff]
        %v211 = vld [vmem:[%s1 + $0x58] sm:$0xff]
        %v212 = vld [vmem:[%s1 + $0x60] sm:$0xff]
        %v213 = vld [vmem:[%s1 + $0x68] sm:$0xff]
        %v214 = vld [vmem:[%s1 + $0x70] sm:$0xff]
        %v215 = vld [vmem:[%s1 + $0x78] sm:$0xff]
        %v216 = vld [vmem:[%s2] sm:$0x1]
        %v218 = vlaneseq
        %v219 = vshrl.u32 %v218, 7
        %v220 = vsub.s32 0, %v219
        %v221 = vrot.slane %v216, %v220
        %223 = vmatprep.subr.mxu0 0.0
        %224 = vmatpush1.msra.mxu0 %v200
        %225 = vmatprep.subr.mxu0 0.0
        %226 = vmatpush1.msra.mxu0 %v201
        %227 = vmatprep.subr.mxu0 0.0
        %228 = vmatpush1.msra.mxu0 %v202
        %229 = vmatprep.subr.mxu0 0.0
        %230 = vmatpush1.msra.mxu0 %v203
        %231 = vmatprep.subr.mxu0 0.0
        %232 = vmatpush1.msra.mxu0 %v204
        %233 = vmatprep.subr.mxu0 0.0
        %234 = vmatpush1.msra.mxu0 %v205
        %235 = vmatprep.subr.mxu0 0.0
        %236 = vmatpush1.msra.mxu0 %v206
        %237 = vmatprep.subr.mxu0 0.0
        %238 = vmatpush1.msra.mxu0 %v207
        %239 = vmatprep.subr.mxu0 0.0
        %240 = vmatpush1.msra.mxu0 %v208
        %241 = vmatprep.subr.mxu0 0.0
        %242 = vmatpush1.msra.mxu0 %v209
        %243 = vmatprep.subr.mxu0 0.0
        %244 = vmatpush1.msra.mxu0 %v210
        %245 = vmatprep.subr.mxu0 0.0
        %246 = vmatpush1.msra.mxu0 %v211
        %247 = vmatprep.subr.mxu0 0.0
        %248 = vmatpush1.msra.mxu0 %v212
        %249 = vmatprep.subr.mxu0 0.0
        %250 = vmatpush1.msra.mxu0 %v213
        %251 = vmatprep.subr.mxu0 0.0
        %252 = vmatpush1.msra.mxu0 %v214
        %253 = vmatprep.subr.mxu0 0.0
        %254 = vmatpush1.msra.mxu0 %v215
        %255 = vmatprep.subr.mxu0 0.0
        %256 = vmatpush1.msra.mxu0 0.0
        %257 = vmatprep.subr.mxu0 0.0
        %258 = vmatpush1.msra.mxu0 0.0
        %259 = vmatprep.subr.mxu0 0.0
        %260 = vmatpush1.msra.mxu0 0.0
        %261 = vmatprep.subr.mxu0 0.0
        %262 = vmatpush1.msra.mxu0 0.0
        %263 = vmatprep.subr.mxu0 0.0
        %264 = vmatpush1.msra.mxu0 0.0
        %265 = vmatprep.subr.mxu0 0.0
        %266 = vmatpush1.msra.mxu0 0.0
        %267 = vmatprep.subr.mxu0 0.0
        %268 = vmatpush1.msra.mxu0 0.0
        %269 = vmatprep.subr.mxu0 0.0
        %270 = vmatpush1.msra.mxu0 0.0
        %271 = vmatprep.subr.mxu0 0.0
        %272 = vmatpush1.msra.mxu0 0.0
        %273 = vmatprep.subr.mxu0 0.0
        %274 = vmatpush1.msra.mxu0 0.0
        %275 = vmatprep.subr.mxu0 0.0
        %276 = vmatpush1.msra.mxu0 0.0
        %277 = vmatprep.subr.mxu0 0.0
        %278 = vmatpush1.msra.mxu0 0.0
        %279 = vmatprep.subr.mxu0 0.0
        %280 = vmatpush1.msra.mxu0 0.0
        %281 = vmatprep.subr.mxu0 0.0
        %282 = vmatpush1.msra.mxu0 0.0
        %283 = vmatprep.subr.mxu0 0.0
        %284 = vmatpush1.msra.mxu0 0.0
        %285 = vmatprep.subr.mxu0 0.0
        %286 = vmatpush1.msra.mxu0 0.0
        %287 = vmatprep.mubr.f32.mxu0 0.0
        %288 = vmatmul.mubr.f32.gmra.mrb[0].mxu0 %v192
        %v289 = vpop.f32.mrb[0].mxu0
        %v290 = vadd.f32 %v221, %v289
        %v291 = vpop.f32.mrb[0].mxu0
        %292 = vmatprep.mubr.f32.mxu0 0.0
        %293 = vmatmul.mubr.f32.gmra.mrb[0].mxu0 %v193
        %v294 = vpop.f32.mrb[0].mxu0
        %v295 = vadd.f32 %v221, %v294
        %v296 = vpop.f32.mrb[0].mxu0
        %297 = vmatprep.mubr.f32.mxu0 0.0
        %298 = vmatmul.mubr.f32.gmra.mrb[0].mxu0 %v194
        %v299 = vpop.f32.mrb[0].mxu0
        %v300 = vadd.f32 %v221, %v299
        %v301 = vpop.f32.mrb[0].mxu0
        %302 = vmatprep.mubr.f32.mxu0 0.0
        %303 = vmatmul.mubr.f32.gmra.mrb[0].mxu0 %v195
        %v304 = vpop.f32.mrb[0].mxu0
        %v305 = vadd.f32 %v221, %v304
        %v306 = vpop.f32.mrb[0].mxu0
        %307 = vmatprep.mubr.f32.mxu0 0.0
        %308 = vmatmul.mubr.f32.gmra.mrb[0].mxu0 %v196
        %v309 = vpop.f32.mrb[0].mxu0
        %v310 = vadd.f32 %v221, %v309
        %v311 = vpop.f32.mrb[0].mxu0
        %312 = vmatprep.mubr.f32.mxu0 0.0
        %313 = vmatmul.mubr.f32.gmra.mrb[0].mxu0 %v197
        %v314 = vpop.f32.mrb[0].mxu0
        %v315 = vadd.f32 %v221, %v314
        %v316 = vpop.f32.mrb[0].mxu0
        %317 = vmatprep.mubr.f32.mxu0 0.0
        %318 = vmatmul.mubr.f32.gmra.mrb[0].mxu0 %v198
        %v319 = vpop.f32.mrb[0].mxu0
        %v320 = vadd.f32 %v221, %v319
        %v321 = vpop.f32.mrb[0].mxu0
        %322 = vmatprep.mubr.f32.mxu0 0.0
        %323 = vmatmul.mubr.f32.gmra.mrb[0].mxu0 %v199
        %v324 = vpop.f32.mrb[0].mxu0
        %v325 = vadd.f32 %v221, %v324
        %v326 = vpop.f32.mrb[0].mxu0
        %327 = vdwg.mxu0
        %328 = vst [vmem:[%s172] sm:$0xff] %v290
        %329 = vst [vmem:[%s172 + $0x8] sm:$0xff] %v295
        %330 = vst [vmem:[%s172 + $0x10] sm:$0xff] %v300
        %331 = vst [vmem:[%s172 + $0x18] sm:$0xff] %v305
        %332 = vst [vmem:[%s172 + $0x20] sm:$0xff] %v310
        %333 = vst [vmem:[%s172 + $0x28] sm:$0xff] %v315
        %334 = vst [vmem:[%s172 + $0x30] sm:$0xff] %v320
        %335 = vst [vmem:[%s172 + $0x38] sm:$0xff] %v325
        %s336 = sand.u32 %s90, 1
        %s337 = sand.u32 %s90, 1
        %s338 = smul.addr %s337, 64
        %s339 = scalar_lea.vmem [#allocation2], %s338
        // Predicated region
        $region33: #{_lambda_.2} parent=31 // pred_check
          %p340 = pneg %p100
        $region34: #{_lambda_.2} parent=31 // pred_check_branch
          %342 = sbr.rel (%p340) target = $region36
        $region35: #{_lambda_.2} parent=31 // pred_region
          %s343 = smul.u32 8, %s14
          %s344 = ssub.s32 13, %s343
          %p345 = scmp.lt.s32.totalorder %s344, 8
          %s346 = scalar_select %p345, %s344, 8
          %s347 = smul.u32 128, %s346
          %p348 = scmp.ne.s32.totalorder 0, %s347
          %s349 = smul.addr %s343, 8
          %s350 = scalar_lea.vmem %s3, %s349
          // Predicated region
          $region37: #{_lambda_.2} parent=35 // pred_check
            %p351 = pneg %p348
          $region38: #{_lambda_.2} parent=35 // pred_check_branch
            %353 = sbr.rel (%p351) target = $region40
          $region39: #{_lambda_.2} parent=35 // pred_region
            // Predicated region
            $region41: #{_lambda_.2} parent=39 // pred_check
              _
            $region42: #{_lambda_.2} parent=39 // pred_check_branch
              %355 = sbr.rel (0) target = $region44
            $region43: #{_lambda_.2} parent=39 // pred_region
              // Predicated region
              $region63: #{_lambda_.2} parent=43 // pred_check
                _
              $region64: #{_lambda_.2} parent=43 // pred_check_branch
                %418 = sbr.rel (0) target = $region66
              $region65: #{_lambda_.2} parent=43 // pred_region
                %s419 = sshrl.u32 %s346, 3
                // While loop
                $region67: #{_lambda_.2} parent=65 // loop_pre_header
                  _
                $region68: #{_lambda_.2} parent=65 // loop_header
                  %s421 = sphi 0, %s423
                  %p422 = scmp.ge.s32.totalorder %s421, %s419
                  %s426 = sphi 0, %s447
                  %s427 = sphi %s339, %s450
                  %s428 = sphi %s350, %s451
                $region69: #{_lambda_.2} parent=65 // loop_header_branch
                  %425 = sbr.rel (%p422) target = $region73
                $region70: #{_lambda_.2} parent=65 // loop_body
                  %v429 = vld [vmem:[%s427] sm:$0xff]
                  %430 = vst [vmem:[%s428] sm:$0xff] %v429
                  %v431 = vld [vmem:[%s427 + $0x8] sm:$0xff]
                  %432 = vst [vmem:[%s428 + $0x8] sm:$0xff] %v431
                  %v433 = vld [vmem:[%s427 + $0x10] sm:$0xff]
                  %434 = vst [vmem:[%s428 + $0x10] sm:$0xff] %v433
                  %v435 = vld [vmem:[%s427 + $0x18] sm:$0xff]
                  %436 = vst [vmem:[%s428 + $0x18] sm:$0xff] %v435
                  %v437 = vld [vmem:[%s427 + $0x20] sm:$0xff]
                  %438 = vst [vmem:[%s428 + $0x20] sm:$0xff] %v437
                  %v439 = vld [vmem:[%s427 + $0x28] sm:$0xff]
                  %440 = vst [vmem:[%s428 + $0x28] sm:$0xff] %v439
                  %v441 = vld [vmem:[%s427 + $0x30] sm:$0xff]
                  %442 = vst [vmem:[%s428 + $0x30] sm:$0xff] %v441
                  %v443 = vld [vmem:[%s427 + $0x38] sm:$0xff]
                  %444 = vst [vmem:[%s428 + $0x38] sm:$0xff] %v443
                  %s445 = sadd.s32 1, %s426
                  %p446 = scmp.ge.s32.totalorder %s445, %s419
                  %s447 = scalar_select %p446, 0, %s445
                  %s448 = smul.u32 %s447, 64
                  %s449 = smul.u32 %s447, 64
                  %s450 = scalar_lea.vmem %s339, %s448 [#allocation2]
                  %s451 = scalar_lea.vmem %s350, %s449
                $region71: #{_lambda_.2} parent=65 // loop_footer
                  %s423 = sadd.s32 %s421, 1
                $region72: #{_lambda_.2} parent=65 // loop_footer_branch
                  %420 = sbr.rel target = $region68
                $region73: #{_lambda_.2} parent=65 // loop_exit
                  _
                %s452 = sshrl.u32 %s346, 3
                %s453 = sand.u32 %s346, 7
                %s454 = smul.u32 %s452, 8
                %s455 = smul.u32 8, %s454
                %s456 = scalar_lea.vmem %s339, %s455 [#allocation2]
                %s457 = smul.u32 8, %s454
                %s458 = scalar_lea.vmem %s350, %s457
                // While loop
                $region74: #{_lambda_.2} parent=65 // loop_pre_header
                  _
                $region75: #{_lambda_.2} parent=65 // loop_header
                  %s460 = sphi 0, %s462
                  %p461 = scmp.ge.s32.totalorder %s460, %s453
                  %s465 = sphi 0, %s472
                  %s466 = sphi %s456, %s475
                  %s467 = sphi %s458, %s476
                $region76: #{_lambda_.2} parent=65 // loop_header_branch
                  %464 = sbr.rel (%p461) target = $region80
                $region77: #{_lambda_.2} parent=65 // loop_body
                  %v468 = vld [vmem:[%s466] sm:$0xff]
                  %469 = vst [vmem:[%s467] sm:$0xff] %v468
                  %s470 = sadd.s32 1, %s465
                  %p471 = scmp.ge.s32.totalorder %s470, %s453
                  %s472 = scalar_select %p471, 0, %s470
                  %s473 = smul.u32 %s472, 8
                  %s474 = smul.u32 %s472, 8
                  %s475 = scalar_lea.vmem %s456, %s473 [#allocation2]
                  %s476 = scalar_lea.vmem %s458, %s474
                $region78: #{_lambda_.2} parent=65 // loop_footer
                  %s462 = sadd.s32 %s460, 1
                $region79: #{_lambda_.2} parent=65 // loop_footer_branch
                  %459 = sbr.rel target = $region75
                $region80: #{_lambda_.2} parent=65 // loop_exit
                  _
              $region66: #{_lambda_.2} parent=43 // pred_fallthru
                _
              // Predicated region
              $region81: #{_lambda_.2} parent=43 // pred_check
                _
              $region82: #{_lambda_.2} parent=43 // pred_check_branch
                %478 = sbr.rel target = $region84
              $region83: #{_lambda_.2} parent=43 // pred_region
                _
              $region84: #{_lambda_.2} parent=43 // pred_fallthru
                _
            $region44: #{_lambda_.2} parent=39 // pred_fallthru
              _
            // Predicated region
            $region45: #{_lambda_.2} parent=39 // pred_check
              _
            $region46: #{_lambda_.2} parent=39 // pred_check_branch
              %357 = sbr.rel target = $region48
            $region47: #{_lambda_.2} parent=39 // pred_region
              %s359 = sshrl.u32 %s346, 3
              // While loop
              $region49: #{_lambda_.2} parent=47 // loop_pre_header
                _
              $region50: #{_lambda_.2} parent=47 // loop_header
                %s361 = sphi 0, %s363
                %p362 = scmp.ge.s32.totalorder %s361, %s359
                %s366 = sphi 0, %s387
                %s367 = sphi %s339, %s390
                %s368 = sphi %s350, %s391
              $region51: #{_lambda_.2} parent=47 // loop_header_branch
                %365 = sbr.rel (%p362) target = $region55
              $region52: #{_lambda_.2} parent=47 // loop_body
                %v369 = vld [vmem:[%s367] sm:$0xff]
                %370 = vst [vmem:[%s368] sm:$0xff] %v369
                %v371 = vld [vmem:[%s367 + $0x8] sm:$0xff]
                %372 = vst [vmem:[%s368 + $0x8] sm:$0xff] %v371
                %v373 = vld [vmem:[%s367 + $0x10] sm:$0xff]
                %374 = vst [vmem:[%s368 + $0x10] sm:$0xff] %v373
                %v375 = vld [vmem:[%s367 + $0x18] sm:$0xff]
                %376 = vst [vmem:[%s368 + $0x18] sm:$0xff] %v375
                %v377 = vld [vmem:[%s367 + $0x20] sm:$0xff]
                %378 = vst [vmem:[%s368 + $0x20] sm:$0xff] %v377
                %v379 = vld [vmem:[%s367 + $0x28] sm:$0xff]
                %380 = vst [vmem:[%s368 + $0x28] sm:$0xff] %v379
                %v381 = vld [vmem:[%s367 + $0x30] sm:$0xff]
                %382 = vst [vmem:[%s368 + $0x30] sm:$0xff] %v381
                %v383 = vld [vmem:[%s367 + $0x38] sm:$0xff]
                %384 = vst [vmem:[%s368 + $0x38] sm:$0xff] %v383
                %s385 = sadd.s32 1, %s366
                %p386 = scmp.ge.s32.totalorder %s385, %s359
                %s387 = scalar_select %p386, 0, %s385
                %s388 = smul.u32 %s387, 64
                %s389 = smul.u32 %s387, 64
                %s390 = scalar_lea.vmem %s339, %s388 [#allocation2]
                %s391 = scalar_lea.vmem %s350, %s389
              $region53: #{_lambda_.2} parent=47 // loop_footer
                %s363 = sadd.s32 %s361, 1
              $region54: #{_lambda_.2} parent=47 // loop_footer_branch
                %360 = sbr.rel target = $region50
              $region55: #{_lambda_.2} parent=47 // loop_exit
                _
              %s392 = sshrl.u32 %s346, 3
              %s393 = sand.u32 %s346, 7
              %s394 = smul.u32 %s392, 8
              %s395 = smul.u32 8, %s394
              %s396 = scalar_lea.vmem %s339, %s395 [#allocation2]
              %s397 = smul.u32 8, %s394
              %s398 = scalar_lea.vmem %s350, %s397
              // While loop
              $region56: #{_lambda_.2} parent=47 // loop_pre_header
                _
              $region57: #{_lambda_.2} parent=47 // loop_header
                %s400 = sphi 0, %s402
                %p401 = scmp.ge.s32.totalorder %s400, %s393
                %s405 = sphi 0, %s412
                %s406 = sphi %s396, %s415
                %s407 = sphi %s398, %s416
              $region58: #{_lambda_.2} parent=47 // loop_header_branch
                %404 = sbr.rel (%p401) target = $region62
              $region59: #{_lambda_.2} parent=47 // loop_body
                %v408 = vld [vmem:[%s406] sm:$0xff]
                %409 = vst [vmem:[%s407] sm:$0xff] %v408
                %s410 = sadd.s32 1, %s405
                %p411 = scmp.ge.s32.totalorder %s410, %s393
                %s412 = scalar_select %p411, 0, %s410
                %s413 = smul.u32 %s412, 8
                %s414 = smul.u32 %s412, 8
                %s415 = scalar_lea.vmem %s396, %s413 [#allocation2]
                %s416 = scalar_lea.vmem %s398, %s414
              $region60: #{_lambda_.2} parent=47 // loop_footer
                %s402 = sadd.s32 %s400, 1
              $region61: #{_lambda_.2} parent=47 // loop_footer_branch
                %399 = sbr.rel target = $region57
              $region62: #{_lambda_.2} parent=47 // loop_exit
                _
            $region48: #{_lambda_.2} parent=39 // pred_fallthru
              _
          $region40: #{_lambda_.2} parent=35 // pred_fallthru
            _
          %479 = vnop
        $region36: #{_lambda_.2} parent=31 // pred_fallthru
          _
      $region32: #{_lambda_.2} parent=5 // pred_fallthru
        _
      %p480 = scmp.le.s32.totalorder 2, %s9
      // Predicated region
      $region85: #{_lambda_.2} parent=5 // pred_check
        %p481 = pneg %p480
      $region86: #{_lambda_.2} parent=5 // pred_check_branch
        %483 = sbr.rel (%p481) target = $region88
      $region87: #{_lambda_.2} parent=5 // pred_region
        %s484 = ssub.s32 %s9, 2
        // Predicated region
        $region89: #{_lambda_.2} parent=87 // pred_check
          %p485 = pneg %p106
        $region90: #{_lambda_.2} parent=87 // pred_check_branch
          %487 = sbr.rel (%p485) target = $region92
        $region91: #{_lambda_.2} parent=87 // pred_region
          %s488 = sand.u32 %s91, 1
          %s489 = sand.u32 %s91, 1
          %s490 = smul.addr %s489, 64
          %s491 = scalar_lea.vmem [#allocation2], %s490
        $region92: #{_lambda_.2} parent=87 // pred_fallthru
          _
      $region88: #{_lambda_.2} parent=5 // pred_fallthru
        _
    $region6: #{_lambda_.2} parent=1 // loop_footer
      %s13 = sadd.s32 1, %s9
    $region7: #{_lambda_.2} parent=1 // loop_footer_branch
      %8 = sbr.rel target = $region3
    $region8: #{_lambda_.2} parent=1 // loop_exit
      _

</llo_original>
